<compile_context>
chip_gen: v5e
topology: v5e:2x2
jax: 0.10.0
libtpu: 0.0.40
codegen_flags: <defaults>
</compile_context>

<pallas_src>
import functools

import jax
import jax.numpy as jnp
from jax.experimental import pallas as pl
from jax.experimental.pallas import tpu as pltpu

NEG_SLOPE = 0.1  # LeakyReLU negative slope from the module
HIDDEN = (128, 256, 512, 256, 128)


def _pick_act_dtype():
    """bf16 inter-layer activations on v6e/v7x (native bf16 VPU); f32 on v5e
    and older (bf16 elementwise would be emulated). Numerics are identical."""
    try:
        kind = jax.devices()[0].device_kind.lower()
    except Exception:
        return jnp.float32
    if any(tag in kind for tag in ("v6", "v7", "tpu7", "7x")):
        return jnp.bfloat16
    return jnp.float32


_ACT_DTYPE = _pick_act_dtype()


def _leaky_relu(x):
    # mul + max: same result as where(x > 0, x, 0.1*x) for 0 < slope < 1.
    return jnp.maximum(x, NEG_SLOPE * x)


def _critic_mlp_kernel(s_ref, a_ref,
                       w1s_ref, w1a_ref, b1_ref,
                       w2_ref, b2_ref,
                       w3_ref, b3_ref,
                       w4_ref, b4_ref,
                       w5_ref, b5_ref,
                       w6_ref, b6_ref,
                       out_ref, *, act_dtype):
    """Whole MLP in one kernel: 7 MXU matmuls + VPU bias/LeakyReLU epilogues.

    Layer-1 is computed as s@W1s + a@W1a + b1 (W1 split along its input axis),
    which is mathematically identical to cat([s, a]) @ W1 + b1 but avoids any
    feature-axis concat.  Dots run in bf16 with f32 accumulation; bias add and
    LeakyReLU run in f32; the result is held in `act_dtype` between layers.
    """
    bf = lambda x: x.astype(jnp.bfloat16)

    h = (jnp.dot(bf(s_ref[...]), w1s_ref[...], preferred_element_type=jnp.float32)
         + jnp.dot(bf(a_ref[...]), w1a_ref[...], preferred_element_type=jnp.float32)
         + b1_ref[...])
    h = _leaky_relu(h).astype(act_dtype)

    for w_ref, b_ref in ((w2_ref, b2_ref), (w3_ref, b3_ref),
                         (w4_ref, b4_ref), (w5_ref, b5_ref)):
        h = jnp.dot(bf(h), w_ref[...], preferred_element_type=jnp.float32) + b_ref[...]
        h = _leaky_relu(h).astype(act_dtype)

    out_ref[...] = (jnp.dot(bf(h), w6_ref[...], preferred_element_type=jnp.float32)
                    + b6_ref[...]).astype(out_ref.dtype)


def init_params(key, state_dim, action_dim, weight_dtype=jnp.bfloat16):
    """PyTorch-style default Linear init (U(-1/sqrt(fan_in), +bound)).

    Weights are stored in bf16 (documented deviation from the f32 module);
    biases stay f32.  The layer-1 weight is pre-split into state / action
    parts so the kernel never needs a feature-axis concat.
    """
    dims = [state_dim + action_dim, *HIDDEN, action_dim]
    ws, bs = [], []
    for i in range(6):
        key, kw, kb = jax.random.split(key, 3)
        fan_in, fan_out = dims[i], dims[i + 1]
        bound = 1.0 / float(fan_in) ** 0.5
        w = jax.random.uniform(kw, (fan_in, fan_out), jnp.float32, -bound, bound)
        b = jax.random.uniform(kb, (1, fan_out), jnp.float32, -bound, bound)
        ws.append(w.astype(weight_dtype))
        bs.append(b)
    return {
        "w1s": ws[0][:state_dim], "w1a": ws[0][state_dim:], "b1": bs[0],
        "w2": ws[1], "b2": bs[1],
        "w3": ws[2], "b3": bs[2],
        "w4": ws[3], "b4": bs[3],
        "w5": ws[4], "b5": bs[4],
        "w6": ws[5], "b6": bs[5],
    }


def _round_up(x, m):
    return ((x + m - 1) // m) * m


def _choose_tb(batch):
    """Batch tile.

    Large tiles amortize the ~0.35 us per-grid-step overhead (this kernel is
    overhead/DMA-bound, not MXU-bound).  For batch >= 16 we force at least two
    grid steps so the parallel batch axis can shard across the two TensorCores
    on v7x.  Tiles are multiples of 8 (sublane alignment); cap at 1024 keeps
    the largest intermediate at (1024, 512) f32 = 2 MB, far below any VMEM
    limit.
    """
    cap = 1024
    if batch < 16:
        return batch  # tiny batch: single whole-array block
    return min(cap, _round_up(pl.cdiv(batch, 2), 8))


def critic_forward(state, action, params):
    state = state.astype(jnp.float32)
    action = action.astype(jnp.float32)
    batch, sd = state.shape
    ad = action.shape[1]

    tb = _choose_tb(batch)
    grid_b = pl.cdiv(batch, tb)
    padded = grid_b * tb
    if padded != batch:
        # Zero-pad ragged batches instead of one giant block; output is sliced
        # back below.  Keeps double-buffering and v7x megacore sharding.
        state = jnp.pad(state, ((0, padded - batch), (0, 0)))
        action = jnp.pad(action, ((0, padded - batch), (0, 0)))

    wb = [
        params["w1s"], params["w1a"], params["b1"],
        params["w2"], params["b2"],
        params["w3"], params["b3"],
        params["w4"], params["b4"],
        params["w5"], params["b5"],
        params["w6"], params["b6"],
    ]

    # Activation/output tiles walk the batch; weights/biases use a constant
    # index_map so they are fetched once and stay VMEM-resident across steps.
    row_spec = lambda f: pl.BlockSpec((tb, f), lambda i: (i, 0))
    const_spec = lambda arr: pl.BlockSpec(arr.shape, lambda i: (0, 0))
    in_specs = [row_spec(sd), row_spec(ad)] + [const_spec(x) for x in wb]
    out_specs = row_spec(ad)

    h = HIDDEN
    flops = 2 * padded * (sd * h[0] + ad * h[0] + h[0] * h[1] + h[1] * h[2]
                          + h[2] * h[3] + h[3] * h[4] + h[4] * ad)
    param_bytes = sum(int(x.size) * x.dtype.itemsize for x in wb)
    io_bytes = padded * (sd + ad + ad) * 4
    cost = pl.CostEstimate(flops=flops, transcendentals=0,
                           bytes_accessed=param_bytes + io_bytes)

    kernel = functools.partial(_critic_mlp_kernel, act_dtype=_ACT_DTYPE)

    out = pl.pallas_call(
        kernel,
        out_shape=jax.ShapeDtypeStruct((padded, ad), jnp.float32),
        grid=(grid_b,),
        in_specs=in_specs,
        out_specs=out_specs,
        compiler_params=pltpu.CompilerParams(
            dimension_semantics=("parallel",),
            vmem_limit_bytes=32 * 1024 * 1024,
        ),
        cost_estimate=cost,
    )(state, action, *wb)

    return out[:batch] if padded != batch else out


def critic_forward_ref(state, action, params):
    """Pure-JAX reference mirroring the kernel's bf16-dot / f32-epilogue math."""
    dot = lambda x, w: jnp.dot(x.astype(jnp.bfloat16), w,
                               preferred_element_type=jnp.float32)
    h = dot(state, params["w1s"]) + dot(action, params["w1a"]) + params["b1"]
    h = jnp.maximum(h, NEG_SLOPE * h)
    for i in (2, 3, 4, 5):
        h = dot(h, params[f"w{i}"]) + params[f"b{i}"]
        h = jnp.maximum(h, NEG_SLOPE * h)
    return dot(h, params["w6"]) + params["b6"]


def critic_forward_ref_f32(state, action, params):
    """All-f32 reference (PyTorch-like math) for a loose sanity check."""
    h = (state @ params["w1s"].astype(jnp.float32)
         + action @ params["w1a"].astype(jnp.float32) + params["b1"])
    h = jnp.where(h > 0, h, NEG_SLOPE * h)
    for i in (2, 3, 4, 5):
        h = h @ params[f"w{i}"].astype(jnp.float32) + params[f"b{i}"]
        h = jnp.where(h > 0, h, NEG_SLOPE * h)
    return h @ params["w6"].astype(jnp.float32) + params["b6"]


if __name__ == "__main__":
    key = jax.random.PRNGKey(0)
    k_s, k_a, k_p, k_s2, k_a2, k_s3, k_a3 = jax.random.split(key, 7)

    state_dim, action_dim = 8, 4
    params = init_params(k_p, state_dim, action_dim)

    critic_fn = jax.jit(critic_forward)  # keep the call fused in a surrounding jit

    # Small batch: single grid step, whole-array activation blocks.
    state = jax.random.normal(k_s, (2, state_dim), jnp.float32)
    action = jax.random.normal(k_a, (2, action_dim), jnp.float32)
    out = jax.block_until_ready(critic_fn(state, action, params))
    ref = critic_forward_ref(state, action, params)
    ref_f32 = critic_forward_ref_f32(state, action, params)
    assert out.shape == (2, action_dim)
    assert jnp.allclose(out, ref, atol=3e-3, rtol=3e-3)
    assert jnp.allclose(out, ref_f32, atol=3e-2, rtol=3e-2)

    # Larger batch: tiled, pipelined path with >= 2 grid steps (TB=256, grid=(2,)).
    state2 = jax.random.normal(k_s2, (512, state_dim), jnp.float32)
    action2 = jax.random.normal(k_a2, (512, action_dim), jnp.float32)
    out2 = jax.block_until_ready(critic_fn(state2, action2, params))
    ref2 = critic_forward_ref(state2, action2, params)
    assert out2.shape == (512, action_dim)
    assert jnp.allclose(out2, ref2, atol=3e-3, rtol=3e-3)

    # Ragged batch: exercises the cdiv grid + zero-pad path (TB=56, grid=(2,)).
    state3 = jax.random.normal(k_s3, (100, state_dim), jnp.float32)
    action3 = jax.random.normal(k_a3, (100, action_dim), jnp.float32)
    out3 = jax.block_until_ready(critic_fn(state3, action3, params))
    ref3 = critic_forward_ref(state3, action3, params)
    assert out3.shape == (100, action_dim)
    assert jnp.allclose(out3, ref3, atol=3e-3, rtol=3e-3)

    print("KERNEL_OK")
</pallas_src>

<mosaic_0001>
module attributes {stable_mosaic.version = 11 : i64} {
  func.func @_critic_mlp_kernel(%arg0: i32, %arg1: memref<2x8xf32, #tpu.memory_space<vmem>>, %arg2: memref<2x4xf32, #tpu.memory_space<vmem>>, %arg3: memref<8x128xbf16, #tpu.memory_space<vmem>>, %arg4: memref<4x128xbf16, #tpu.memory_space<vmem>>, %arg5: memref<1x128xf32, #tpu.memory_space<vmem>>, %arg6: memref<128x256xbf16, #tpu.memory_space<vmem>>, %arg7: memref<1x256xf32, #tpu.memory_space<vmem>>, %arg8: memref<256x512xbf16, #tpu.memory_space<vmem>>, %arg9: memref<1x512xf32, #tpu.memory_space<vmem>>, %arg10: memref<512x256xbf16, #tpu.memory_space<vmem>>, %arg11: memref<1x256xf32, #tpu.memory_space<vmem>>, %arg12: memref<256x128xbf16, #tpu.memory_space<vmem>>, %arg13: memref<1x128xf32, #tpu.memory_space<vmem>>, %arg14: memref<128x4xbf16, #tpu.memory_space<vmem>>, %arg15: memref<1x4xf32, #tpu.memory_space<vmem>>, %arg16: memref<2x4xf32, #tpu.memory_space<vmem>>) attributes {dimension_semantics = [#tpu.dimension_semantics<parallel>], iteration_bounds = array<i64: 1>, scalar_prefetch = 0 : i64, scratch_operands = 0 : i64, tpu.core_type = #tpu.core_type<tc>, window_params = [{transform_indices = @transform_0, window_bounds = array<i64: 2, 8>}, {transform_indices = @transform_1, window_bounds = array<i64: 2, 4>}, {pipeline_mode = #tpu.pipeline_mode<synchronous>, transform_indices = @transform_2, window_bounds = array<i64: 8, 128>}, {pipeline_mode = #tpu.pipeline_mode<synchronous>, transform_indices = @transform_3, window_bounds = array<i64: 4, 128>}, {pipeline_mode = #tpu.pipeline_mode<synchronous>, transform_indices = @transform_4, window_bounds = array<i64: 1, 128>}, {pipeline_mode = #tpu.pipeline_mode<synchronous>, transform_indices = @transform_5, window_bounds = array<i64: 128, 256>}, {pipeline_mode = #tpu.pipeline_mode<synchronous>, transform_indices = @transform_6, window_bounds = array<i64: 1, 256>}, {pipeline_mode = #tpu.pipeline_mode<synchronous>, transform_indices = @transform_7, window_bounds = array<i64: 256, 512>}, {pipeline_mode = #tpu.pipeline_mode<synchronous>, transform_indices = @transform_8, window_bounds = array<i64: 1, 512>}, {pipeline_mode = #tpu.pipeline_mode<synchronous>, transform_indices = @transform_9, window_bounds = array<i64: 512, 256>}, {pipeline_mode = #tpu.pipeline_mode<synchronous>, transform_indices = @transform_10, window_bounds = array<i64: 1, 256>}, {pipeline_mode = #tpu.pipeline_mode<synchronous>, transform_indices = @transform_11, window_bounds = array<i64: 256, 128>}, {pipeline_mode = #tpu.pipeline_mode<synchronous>, transform_indices = @transform_12, window_bounds = array<i64: 1, 128>}, {pipeline_mode = #tpu.pipeline_mode<synchronous>, transform_indices = @transform_13, window_bounds = array<i64: 128, 4>}, {pipeline_mode = #tpu.pipeline_mode<synchronous>, transform_indices = @transform_14, window_bounds = array<i64: 1, 4>}, {transform_indices = @transform_15, window_bounds = array<i64: 2, 4>}]} {
    %c0 = arith.constant 0 : index
    %c0_0 = arith.constant 0 : index
    %0 = vector.load %arg1[%c0, %c0_0] : memref<2x8xf32, #tpu.memory_space<vmem>>, vector<2x8xf32>
    %1 = arith.truncf %0 : vector<2x8xf32> to vector<2x8xbf16>
    %c0_1 = arith.constant 0 : index
    %c0_2 = arith.constant 0 : index
    %2 = vector.load %arg3[%c0_1, %c0_2] : memref<8x128xbf16, #tpu.memory_space<vmem>>, vector<8x128xbf16>
    %cst = arith.constant dense<0.000000e+00> : vector<2x128xf32>
    %3 = tpu.matmul %1, %2, %cst {dimension_numbers = #tpu.dot_dimension_numbers<[1], [0], [0], [1], [0, 0, 1, 1], [], []>} : vector<2x8xbf16>, vector<8x128xbf16>, vector<2x128xf32> -> vector<2x128xf32>
    %c0_3 = arith.constant 0 : index
    %c0_4 = arith.constant 0 : index
    %4 = vector.load %arg2[%c0_3, %c0_4] : memref<2x4xf32, #tpu.memory_space<vmem>>, vector<2x4xf32>
    %5 = arith.truncf %4 : vector<2x4xf32> to vector<2x4xbf16>
    %c0_5 = arith.constant 0 : index
    %c0_6 = arith.constant 0 : index
    %6 = vector.load %arg4[%c0_5, %c0_6] : memref<4x128xbf16, #tpu.memory_space<vmem>>, vector<4x128xbf16>
    %cst_7 = arith.constant dense<0.000000e+00> : vector<2x128xf32>
    %7 = tpu.matmul %5, %6, %cst_7 {dimension_numbers = #tpu.dot_dimension_numbers<[1], [0], [0], [1], [0, 0, 1, 1], [], []>} : vector<2x4xbf16>, vector<4x128xbf16>, vector<2x128xf32> -> vector<2x128xf32>
    %8 = arith.addf %3, %7 : vector<2x128xf32>
    %c0_8 = arith.constant 0 : index
    %c0_9 = arith.constant 0 : index
    %9 = vector.load %arg5[%c0_8, %c0_9] : memref<1x128xf32, #tpu.memory_space<vmem>>, vector<1x128xf32>
    %10 = vector.broadcast %9 : vector<1x128xf32> to vector<2x128xf32>
    %11 = arith.addf %8, %10 : vector<2x128xf32>
    %cst_10 = arith.constant 1.000000e-01 : f32
    %12 = vector.broadcast %cst_10 : f32 to vector<2x128xf32>
    %13 = arith.mulf %12, %11 : vector<2x128xf32>
    %14 = arith.maximumf %11, %13 : vector<2x128xf32>
    %15 = arith.truncf %14 : vector<2x128xf32> to vector<2x128xbf16>
    %c0_11 = arith.constant 0 : index
    %c0_12 = arith.constant 0 : index
    %16 = vector.load %arg6[%c0_11, %c0_12] : memref<128x256xbf16, #tpu.memory_space<vmem>>, vector<128x256xbf16>
    %cst_13 = arith.constant dense<0.000000e+00> : vector<2x256xf32>
    %17 = tpu.matmul %15, %16, %cst_13 {dimension_numbers = #tpu.dot_dimension_numbers<[1], [0], [0], [1], [0, 0, 1, 1], [], []>} : vector<2x128xbf16>, vector<128x256xbf16>, vector<2x256xf32> -> vector<2x256xf32>
    %c0_14 = arith.constant 0 : index
    %c0_15 = arith.constant 0 : index
    %18 = vector.load %arg7[%c0_14, %c0_15] : memref<1x256xf32, #tpu.memory_space<vmem>>, vector<1x256xf32>
    %19 = vector.broadcast %18 : vector<1x256xf32> to vector<2x256xf32>
    %20 = arith.addf %17, %19 : vector<2x256xf32>
    %cst_16 = arith.constant 1.000000e-01 : f32
    %21 = vector.broadcast %cst_16 : f32 to vector<2x256xf32>
    %22 = arith.mulf %21, %20 : vector<2x256xf32>
    %23 = arith.maximumf %20, %22 : vector<2x256xf32>
    %24 = arith.truncf %23 : vector<2x256xf32> to vector<2x256xbf16>
    %c0_17 = arith.constant 0 : index
    %c0_18 = arith.constant 0 : index
    %25 = vector.load %arg8[%c0_17, %c0_18] : memref<256x512xbf16, #tpu.memory_space<vmem>>, vector<256x512xbf16>
    %cst_19 = arith.constant dense<0.000000e+00> : vector<2x512xf32>
    %26 = tpu.matmul %24, %25, %cst_19 {dimension_numbers = #tpu.dot_dimension_numbers<[1], [0], [0], [1], [0, 0, 1, 1], [], []>} : vector<2x256xbf16>, vector<256x512xbf16>, vector<2x512xf32> -> vector<2x512xf32>
    %c0_20 = arith.constant 0 : index
    %c0_21 = arith.constant 0 : index
    %27 = vector.load %arg9[%c0_20, %c0_21] : memref<1x512xf32, #tpu.memory_space<vmem>>, vector<1x512xf32>
    %28 = vector.broadcast %27 : vector<1x512xf32> to vector<2x512xf32>
    %29 = arith.addf %26, %28 : vector<2x512xf32>
    %cst_22 = arith.constant 1.000000e-01 : f32
    %30 = vector.broadcast %cst_22 : f32 to vector<2x512xf32>
    %31 = arith.mulf %30, %29 : vector<2x512xf32>
    %32 = arith.maximumf %29, %31 : vector<2x512xf32>
    %33 = arith.truncf %32 : vector<2x512xf32> to vector<2x512xbf16>
    %c0_23 = arith.constant 0 : index
    %c0_24 = arith.constant 0 : index
    %34 = vector.load %arg10[%c0_23, %c0_24] : memref<512x256xbf16, #tpu.memory_space<vmem>>, vector<512x256xbf16>
    %cst_25 = arith.constant dense<0.000000e+00> : vector<2x256xf32>
    %35 = tpu.matmul %33, %34, %cst_25 {dimension_numbers = #tpu.dot_dimension_numbers<[1], [0], [0], [1], [0, 0, 1, 1], [], []>} : vector<2x512xbf16>, vector<512x256xbf16>, vector<2x256xf32> -> vector<2x256xf32>
    %c0_26 = arith.constant 0 : index
    %c0_27 = arith.constant 0 : index
    %36 = vector.load %arg11[%c0_26, %c0_27] : memref<1x256xf32, #tpu.memory_space<vmem>>, vector<1x256xf32>
    %37 = vector.broadcast %36 : vector<1x256xf32> to vector<2x256xf32>
    %38 = arith.addf %35, %37 : vector<2x256xf32>
    %cst_28 = arith.constant 1.000000e-01 : f32
    %39 = vector.broadcast %cst_28 : f32 to vector<2x256xf32>
    %40 = arith.mulf %39, %38 : vector<2x256xf32>
    %41 = arith.maximumf %38, %40 : vector<2x256xf32>
    %42 = arith.truncf %41 : vector<2x256xf32> to vector<2x256xbf16>
    %c0_29 = arith.constant 0 : index
    %c0_30 = arith.constant 0 : index
    %43 = vector.load %arg12[%c0_29, %c0_30] : memref<256x128xbf16, #tpu.memory_space<vmem>>, vector<256x128xbf16>
    %cst_31 = arith.constant dense<0.000000e+00> : vector<2x128xf32>
    %44 = tpu.matmul %42, %43, %cst_31 {dimension_numbers = #tpu.dot_dimension_numbers<[1], [0], [0], [1], [0, 0, 1, 1], [], []>} : vector<2x256xbf16>, vector<256x128xbf16>, vector<2x128xf32> -> vector<2x128xf32>
    %c0_32 = arith.constant 0 : index
    %c0_33 = arith.constant 0 : index
    %45 = vector.load %arg13[%c0_32, %c0_33] : memref<1x128xf32, #tpu.memory_space<vmem>>, vector<1x128xf32>
    %46 = vector.broadcast %45 : vector<1x128xf32> to vector<2x128xf32>
    %47 = arith.addf %44, %46 : vector<2x128xf32>
    %cst_34 = arith.constant 1.000000e-01 : f32
    %48 = vector.broadcast %cst_34 : f32 to vector<2x128xf32>
    %49 = arith.mulf %48, %47 : vector<2x128xf32>
    %50 = arith.maximumf %47, %49 : vector<2x128xf32>
    %51 = arith.truncf %50 : vector<2x128xf32> to vector<2x128xbf16>
    %c0_35 = arith.constant 0 : index
    %c0_36 = arith.constant 0 : index
    %52 = vector.load %arg14[%c0_35, %c0_36] : memref<128x4xbf16, #tpu.memory_space<vmem>>, vector<128x4xbf16>
    %cst_37 = arith.constant dense<0.000000e+00> : vector<2x4xf32>
    %53 = tpu.matmul %51, %52, %cst_37 {dimension_numbers = #tpu.dot_dimension_numbers<[1], [0], [0], [1], [0, 0, 1, 1], [], []>} : vector<2x128xbf16>, vector<128x4xbf16>, vector<2x4xf32> -> vector<2x4xf32>
    %c0_38 = arith.constant 0 : index
    %c0_39 = arith.constant 0 : index
    %54 = vector.load %arg15[%c0_38, %c0_39] : memref<1x4xf32, #tpu.memory_space<vmem>>, vector<1x4xf32>
    %55 = vector.broadcast %54 : vector<1x4xf32> to vector<2x4xf32>
    %56 = arith.addf %53, %55 : vector<2x4xf32>
    %c0_40 = arith.constant 0 : index
    %c0_41 = arith.constant 0 : index
    %57 = vector.load %arg16[%c0_40, %c0_41] : memref<2x4xf32, #tpu.memory_space<vmem>>, vector<2x4xf32>
    tpu.vector_store %arg16[%c0_40, %c0_41], %56 {strides = array<i32>} : memref<2x4xf32, #tpu.memory_space<vmem>>, vector<2x4xf32>,
    return
  }
  func.func @transform_0(%arg0: i32) -> (i32, i32) {
    %c0_i32 = arith.constant 0 : i32
    %c0_i32_0 = arith.constant 0 : i32
    return %arg0, %c0_i32 : i32, i32
  }
  func.func @transform_1(%arg0: i32) -> (i32, i32) {
    %c0_i32 = arith.constant 0 : i32
    %c0_i32_0 = arith.constant 0 : i32
    return %arg0, %c0_i32 : i32, i32
  }
  func.func @transform_2(%arg0: i32) -> (i32, i32) {
    %c0_i32 = arith.constant 0 : i32
    %c0_i32_0 = arith.constant 0 : i32
    %c0_i32_1 = arith.constant 0 : i32
    return %c0_i32, %c0_i32_0 : i32, i32
  }
  func.func @transform_3(%arg0: i32) -> (i32, i32) {
    %c0_i32 = arith.constant 0 : i32
    %c0_i32_0 = arith.constant 0 : i32
    %c0_i32_1 = arith.constant 0 : i32
    return %c0_i32, %c0_i32_0 : i32, i32
  }
  func.func @transform_4(%arg0: i32) -> (i32, i32) {
    %c0_i32 = arith.constant 0 : i32
    %c0_i32_0 = arith.constant 0 : i32
    %c0_i32_1 = arith.constant 0 : i32
    return %c0_i32, %c0_i32_0 : i32, i32
  }
  func.func @transform_5(%arg0: i32) -> (i32, i32) {
    %c0_i32 = arith.constant 0 : i32
    %c0_i32_0 = arith.constant 0 : i32
    %c0_i32_1 = arith.constant 0 : i32
    return %c0_i32, %c0_i32_0 : i32, i32
  }
  func.func @transform_6(%arg0: i32) -> (i32, i32) {
    %c0_i32 = arith.constant 0 : i32
    %c0_i32_0 = arith.constant 0 : i32
    %c0_i32_1 = arith.constant 0 : i32
    return %c0_i32, %c0_i32_0 : i32, i32
  }
  func.func @transform_7(%arg0: i32) -> (i32, i32) {
    %c0_i32 = arith.constant 0 : i32
    %c0_i32_0 = arith.constant 0 : i32
    %c0_i32_1 = arith.constant 0 : i32
    return %c0_i32, %c0_i32_0 : i32, i32
  }
  func.func @transform_8(%arg0: i32) -> (i32, i32) {
    %c0_i32 = arith.constant 0 : i32
    %c0_i32_0 = arith.constant 0 : i32
    %c0_i32_1 = arith.constant 0 : i32
    return %c0_i32, %c0_i32_0 : i32, i32
  }
  func.func @transform_9(%arg0: i32) -> (i32, i32) {
    %c0_i32 = arith.constant 0 : i32
    %c0_i32_0 = arith.constant 0 : i32
    %c0_i32_1 = arith.constant 0 : i32
    return %c0_i32, %c0_i32_0 : i32, i32
  }
  func.func @transform_10(%arg0: i32) -> (i32, i32) {
    %c0_i32 = arith.constant 0 : i32
    %c0_i32_0 = arith.constant 0 : i32
    %c0_i32_1 = arith.constant 0 : i32
    return %c0_i32, %c0_i32_0 : i32, i32
  }
  func.func @transform_11(%arg0: i32) -> (i32, i32) {
    %c0_i32 = arith.constant 0 : i32
    %c0_i32_0 = arith.constant 0 : i32
    %c0_i32_1 = arith.constant 0 : i32
    return %c0_i32, %c0_i32_0 : i32, i32
  }
  func.func @transform_12(%arg0: i32) -> (i32, i32) {
    %c0_i32 = arith.constant 0 : i32
    %c0_i32_0 = arith.constant 0 : i32
    %c0_i32_1 = arith.constant 0 : i32
    return %c0_i32, %c0_i32_0 : i32, i32
  }
  func.func @transform_13(%arg0: i32) -> (i32, i32) {
    %c0_i32 = arith.constant 0 : i32
    %c0_i32_0 = arith.constant 0 : i32
    %c0_i32_1 = arith.constant 0 : i32
    return %c0_i32, %c0_i32_0 : i32, i32
  }
  func.func @transform_14(%arg0: i32) -> (i32, i32) {
    %c0_i32 = arith.constant 0 : i32
    %c0_i32_0 = arith.constant 0 : i32
    %c0_i32_1 = arith.constant 0 : i32
    return %c0_i32, %c0_i32_0 : i32, i32
  }
  func.func @transform_15(%arg0: i32) -> (i32, i32) {
    %c0_i32 = arith.constant 0 : i32
    %c0_i32_0 = arith.constant 0 : i32
    return %arg0, %c0_i32 : i32, i32
  }
}

</mosaic_0001>

<llo_original>
// kernel: critic_forward.1
$region0: #{critic_forward.1}
  #allocation0 [shape = 'u32[]', space=smem, size = 0x4, offset = 0x4, fixed_abs, tag = 'smem constant byte address 0x4 - core index']
  #allocation1 [shape = 'u32[72,128]{1,0:T(1,128)}', space=vmem, size = 0x9000, scoped, tag = 'internal scratch']
  %s0 = inlined_call_operand.vmem [shape: f32[2,8], index: 0, kind: input, shape index: {}]
  %s1 = inlined_call_operand.vmem [shape: f32[2,4], index: 1, kind: input, shape index: {}]
  %s2 = inlined_call_operand.vmem [shape: bf16[8,128], index: 2, kind: input, shape index: {}]
  %s3 = inlined_call_operand.vmem [shape: bf16[4,128], index: 3, kind: input, shape index: {}]
  %s4 = inlined_call_operand.vmem [shape: f32[1,128], index: 4, kind: input, shape index: {}]
  %s5 = inlined_call_operand.hbm [shape: bf16[128,256], index: 5, kind: input, shape index: {}]
  %s6 = inlined_call_operand.vmem [shape: f32[1,256], index: 6, kind: input, shape index: {}]
  %s7 = inlined_call_operand.hbm [shape: bf16[256,512], index: 7, kind: input, shape index: {}]
  %s8 = inlined_call_operand.vmem [shape: f32[1,512], index: 8, kind: input, shape index: {}]
  %s9 = inlined_call_operand.hbm [shape: bf16[512,256], index: 9, kind: input, shape index: {}]
  %s10 = inlined_call_operand.vmem [shape: f32[1,256], index: 10, kind: input, shape index: {}]
  %s11 = inlined_call_operand.hbm [shape: bf16[256,128], index: 11, kind: input, shape index: {}]
  %s12 = inlined_call_operand.vmem [shape: f32[1,128], index: 12, kind: input, shape index: {}]
  %s13 = inlined_call_operand.vmem [shape: bf16[128,4], index: 13, kind: input, shape index: {}]
  %s14 = inlined_call_operand.vmem [shape: f32[1,4], index: 14, kind: input, shape index: {}]
  %s15 = inlined_call_operand.hbm [shape: f32[2,4], index: 15, kind: output, shape index: {}]
  %s16 = sld [smem:[#allocation0]]
  $region86: #{critic_forward.1} parent=0
    _
  %s18 = ssub.s32 1, %s16
  %s19 = scalar_select 0, %s18, %s16
  $region1: #{critic_forward.1} parent=0
    #allocation2 [shape = 'u8[65536]{0}', space=vmem, size = 0x10000, scoped, tag = 'input window, operand 5, single buffered']
    #allocation3 [shape = 's32[1]{0}', space=sflag, size = 0x4, scoped, tag = 'scoped memory for critic_forward.1']
    #allocation4 [shape = 's32[1]{0}', space=sflag, size = 0x4, scoped, tag = 'scoped memory for critic_forward.1']
    #allocation5 [shape = 'u8[262144]{0}', space=vmem, size = 0x40000, scoped, tag = 'input window, operand 7, single buffered']
    #allocation6 [shape = 's32[1]{0}', space=sflag, size = 0x4, scoped, tag = 'scoped memory for critic_forward.1']
    #allocation7 [shape = 'u8[262144]{0}', space=vmem, size = 0x40000, scoped, tag = 'input window, operand 9, single buffered']
    #allocation8 [shape = 'u8[65536]{0}', space=vmem, size = 0x10000, scoped, tag = 'input window, operand 11, single buffered']
    #allocation9 [shape = 's32[1]{0}', space=sflag, size = 0x4, scoped, tag = 'scoped memory for critic_forward.1']
    #allocation10 [shape = 'u8[1024]{0}', space=vmem, size = 0x400, scoped, tag = 'output window, operand 0, single buffered']
    %20 = vsyncpa [#allocation3], 0
    %21 = vsyncpa [#allocation6], 0
    %22 = vsyncpa [#allocation9], 0
    %23 = vsyncpa [#allocation4], 0
    // Predicated region
    $region2: #{critic_forward.1} parent=1 // pred_check
      _
    $region3: #{critic_forward.1} parent=1 // pred_check_branch
      %25 = sbr.rel (0) target = $region5
    $region4: #{critic_forward.1} parent=1 // pred_region
      _
    $region5: #{critic_forward.1} parent=1 // pred_fallthru
      _
    // Predicated region
    $region6: #{critic_forward.1} parent=1 // pred_check
      _
    $region7: #{critic_forward.1} parent=1 // pred_check_branch
      %27 = sbr.rel (0) target = $region9
    $region8: #{critic_forward.1} parent=1 // pred_region
      _
    $region9: #{critic_forward.1} parent=1 // pred_fallthru
      _
    // Predicated region
    $region10: #{critic_forward.1} parent=1 // pred_check
      _
    $region11: #{critic_forward.1} parent=1 // pred_check_branch
      %29 = sbr.rel (0) target = $region13
    $region12: #{critic_forward.1} parent=1 // pred_region
      _
    $region13: #{critic_forward.1} parent=1 // pred_fallthru
      _
    // Predicated region
    $region14: #{critic_forward.1} parent=1 // pred_check
      _
    $region15: #{critic_forward.1} parent=1 // pred_check_branch
      %31 = sbr.rel (0) target = $region17
    $region16: #{critic_forward.1} parent=1 // pred_region
      _
    $region17: #{critic_forward.1} parent=1 // pred_fallthru
      _
    // Predicated region
    $region18: #{critic_forward.1} parent=1 // pred_check
      _
    $region19: #{critic_forward.1} parent=1 // pred_check_branch
      %33 = sbr.rel (0) target = $region21
    $region20: #{critic_forward.1} parent=1 // pred_region
      _
    $region21: #{critic_forward.1} parent=1 // pred_fallthru
      _
    // Predicated region
    $region22: #{critic_forward.1} parent=1 // pred_check
      _
    $region23: #{critic_forward.1} parent=1 // pred_check_branch
      %35 = sbr.rel (0) target = $region25
    $region24: #{critic_forward.1} parent=1 // pred_region
      %37 = vsyncadd [#allocation3], 0
      %s38 = sshll.u32 %s5, 4
      %s39 = int_to_ptr.hbm [resolvable:$true] %s38
      %s40 = sshll.u32 [#allocation2], 4
      %s41 = int_to_ptr.vmem [resolvable:$true] %s40
      %46 = dma.hbm_to_vmem [thread:$0]  %s39, 2048, %s41, [#allocation3], 128, 128, 8
    $region25: #{critic_forward.1} parent=1 // pred_fallthru
      _
    // Predicated region
    $region26: #{critic_forward.1} parent=1 // pred_check
      _
    $region27: #{critic_forward.1} parent=1 // pred_check_branch
      %48 = sbr.rel (0) target = $region29
    $region28: #{critic_forward.1} parent=1 // pred_region
      _
    $region29: #{critic_forward.1} parent=1 // pred_fallthru
      _
    // Predicated region
    $region30: #{critic_forward.1} parent=1 // pred_check
      _
    $region31: #{critic_forward.1} parent=1 // pred_check_branch
      %50 = sbr.rel (0) target = $region33
    $region32: #{critic_forward.1} parent=1 // pred_region
      %52 = vsyncadd [#allocation6], 0
      %s53 = sshll.u32 %s7, 4
      %s54 = int_to_ptr.hbm [resolvable:$true] %s53
      %s55 = sshll.u32 [#allocation5], 4
      %s56 = int_to_ptr.vmem [resolvable:$true] %s55
      %61 = dma.hbm_to_vmem [thread:$0]  %s54, 8192, %s56, [#allocation6], 256, 256, 16
    $region33: #{critic_forward.1} parent=1 // pred_fallthru
      _
    // Predicated region
    $region34: #{critic_forward.1} parent=1 // pred_check
      _
    $region35: #{critic_forward.1} parent=1 // pred_check_branch
      %63 = sbr.rel (0) target = $region37
    $region36: #{critic_forward.1} parent=1 // pred_region
      _
    $region37: #{critic_forward.1} parent=1 // pred_fallthru
      _
    // Predicated region
    $region38: #{critic_forward.1} parent=1 // pred_check
      _
    $region39: #{critic_forward.1} parent=1 // pred_check_branch
      %65 = sbr.rel (0) target = $region41
    $region40: #{critic_forward.1} parent=1 // pred_region
      %67 = vsyncadd [#allocation6], 0
      %s68 = sshll.u32 %s9, 4
      %s69 = int_to_ptr.hbm [resolvable:$true] %s68
      %s70 = sshll.u32 [#allocation7], 4
      %s71 = int_to_ptr.vmem [resolvable:$true] %s70
      %76 = dma.hbm_to_vmem [thread:$0]  %s69, 8192, %s71, [#allocation6], 128, 128, 8
    $region41: #{critic_forward.1} parent=1 // pred_fallthru
      _
    // Predicated region
    $region42: #{critic_forward.1} parent=1 // pred_check
      _
    $region43: #{critic_forward.1} parent=1 // pred_check_branch
      %78 = sbr.rel (0) target = $region45
    $region44: #{critic_forward.1} parent=1 // pred_region
      _
    $region45: #{critic_forward.1} parent=1 // pred_fallthru
      _
    // Predicated region
    $region46: #{critic_forward.1} parent=1 // pred_check
      _
    $region47: #{critic_forward.1} parent=1 // pred_check_branch
      %80 = sbr.rel (0) target = $region49
    $region48: #{critic_forward.1} parent=1 // pred_region
      %82 = vsyncadd [#allocation9], 0
      %s83 = sshll.u32 %s11, 4
      %s84 = int_to_ptr.hbm [resolvable:$true] %s83
      %s85 = sshll.u32 [#allocation8], 4
      %s86 = int_to_ptr.vmem [resolvable:$true] %s85
      %91 = dma.hbm_to_vmem [thread:$0]  %s84, 2048, %s86, [#allocation9], 64, 64, 4
    $region49: #{critic_forward.1} parent=1 // pred_fallthru
      _
    // Predicated region
    $region50: #{critic_forward.1} parent=1 // pred_check
      _
    $region51: #{critic_forward.1} parent=1 // pred_check_branch
      %93 = sbr.rel (0) target = $region53
    $region52: #{critic_forward.1} parent=1 // pred_region
      _
    $region53: #{critic_forward.1} parent=1 // pred_fallthru
      _
    // Predicated region
    $region54: #{critic_forward.1} parent=1 // pred_check
      _
    $region55: #{critic_forward.1} parent=1 // pred_check_branch
      %95 = sbr.rel (0) target = $region57
    $region56: #{critic_forward.1} parent=1 // pred_region
      _
    $region57: #{critic_forward.1} parent=1 // pred_fallthru
      _
    // Predicated region
    $region58: #{critic_forward.1} parent=1 // pred_check
      _
    $region59: #{critic_forward.1} parent=1 // pred_check_branch
      %97 = sbr.rel (0) target = $region61
    $region60: #{critic_forward.1} parent=1 // pred_region
      _
    $region61: #{critic_forward.1} parent=1 // pred_fallthru
      _
    // Predicated region
    $region62: #{critic_forward.1} parent=1 // pred_check
      _
    $region63: #{critic_forward.1} parent=1 // pred_check_branch
      %99 = sbr.rel (0) target = $region65
    $region64: #{critic_forward.1} parent=1 // pred_region
      %101 = dma.done [#allocation3], 2048
    $region65: #{critic_forward.1} parent=1 // pred_fallthru
      _
    // Predicated region
    $region66: #{critic_forward.1} parent=1 // pred_check
      _
    $region67: #{critic_forward.1} parent=1 // pred_check_branch
      %103 = sbr.rel (0) target = $region69
    $region68: #{critic_forward.1} parent=1 // pred_region
      %105 = dma.done [#allocation6], 8192
    $region69: #{critic_forward.1} parent=1 // pred_fallthru
      _
    // Predicated region
    $region70: #{critic_forward.1} parent=1 // pred_check
      _
    $region71: #{critic_forward.1} parent=1 // pred_check_branch
      %107 = sbr.rel (0) target = $region73
    $region72: #{critic_forward.1} parent=1 // pred_region
      %109 = dma.done [#allocation6], 8192
    $region73: #{critic_forward.1} parent=1 // pred_fallthru
      _
    // Predicated region
    $region74: #{critic_forward.1} parent=1 // pred_check
      _
    $region75: #{critic_forward.1} parent=1 // pred_check_branch
      %111 = sbr.rel (0) target = $region77
    $region76: #{critic_forward.1} parent=1 // pred_region
      %113 = dma.done [#allocation9], 2048
    $region77: #{critic_forward.1} parent=1 // pred_fallthru
      _
    %v115 = vld [vmem:[%s0] sm:$0x3]
    %v116 = vpack.c.bf16 %v115, %v115
    %v117 = vld [vmem:[%s2] sm:$0xf]
    %v118 = vld [vmem:[%s1] sm:$0x3]
    %v119 = vpack.c.bf16 %v118, %v118
    %v120 = vld [vmem:[%s3] sm:$0x3]
    %vm121 = vcmask 31744
    %v123 = vsel %vm121, %v119, 0
    %vm125 = vcmask 1041408
    %v127 = vsel %vm125, %v120, 0
    %129 = vmatpush.bf16.msra.mxu0 0
    %130 = vmatpush.bf16.msra.mxu0 0
    %131 = vmatpush.bf16.msra.mxu0 0
    %132 = vmatpush.bf16.msra.mxu0 0
    %133 = vmatpush.bf16.msra.mxu0 0
    %134 = vmatpush.bf16.msra.mxu0 0
    %135 = vmatpush.bf16.msra.mxu0 0
    %136 = vmatpush.bf16.msra.mxu0 %v127
    %137 = vmatmul.bf16.gmra.mxu0 %v123
    %v138 = vpop.f32.mrf.mxu0
    %v139 = vadd.f32 0.0, %v138
    %v140 = vpop.f32.mrf.mxu0
    %141 = vdwg.mxu0
    %vm142 = vcmask 64512
    %v144 = vsel %vm142, %v116, 0
    %vm146 = vcmask 1043456
    %v148 = vsel %vm146, %v117, 0
    %150 = vmatpush.bf16.msra.mxu0 0
    %151 = vmatpush.bf16.msra.mxu0 0
    %152 = vmatpush.bf16.msra.mxu0 0
    %153 = vmatpush.bf16.msra.mxu0 0
    %154 = vmatpush.bf16.msra.mxu0 0
    %155 = vmatpush.bf16.msra.mxu0 0
    %156 = vmatpush.bf16.msra.mxu0 0
    %157 = vmatpush.bf16.msra.mxu0 %v148
    %158 = vmatmul.bf16.gmra.mxu0 %v144
    %v159 = vpop.f32.mrf.mxu0
    %v160 = vadd.f32 %v139, %v159
    %v161 = vpop.f32.mrf.mxu0
    %162 = vdwg.mxu0
    %v163 = vld [vmem:[%s4] sm:$0x1]
    %v165 = vperm.slane %v163, 0
    %v167 = vadd.f32 %v160, %v165
    %v168 = vmul.f32 %v167, 0.1
    %v169 = vmax.f32 %v167, %v168
    %v170 = vpack.c.bf16 %v169, %v169
    %v171 = vld [vmem:[#allocation2] sm:$0xff]
    %v172 = vld [vmem:[#allocation2 + $0x8] sm:$0xff]
    %v173 = vld [vmem:[#allocation2 + $0x10] sm:$0xff]
    %v174 = vld [vmem:[#allocation2 + $0x18] sm:$0xff]
    %v175 = vld [vmem:[#allocation2 + $0x20] sm:$0xff]
    %v176 = vld [vmem:[#allocation2 + $0x28] sm:$0xff]
    %v177 = vld [vmem:[#allocation2 + $0x30] sm:$0xff]
    %v178 = vld [vmem:[#allocation2 + $0x38] sm:$0xff]
    %v179 = vld [vmem:[#allocation2 + $0x40] sm:$0xff]
    %v180 = vld [vmem:[#allocation2 + $0x48] sm:$0xff]
    %v181 = vld [vmem:[#allocation2 + $0x50] sm:$0xff]
    %v182 = vld [vmem:[#allocation2 + $0x58] sm:$0xff]
    %v183 = vld [vmem:[#allocation2 + $0x60] sm:$0xff]
    %v184 = vld [vmem:[#allocation2 + $0x68] sm:$0xff]
    %v185 = vld [vmem:[#allocation2 + $0x70] sm:$0xff]
    %v186 = vld [vmem:[#allocation2 + $0x78] sm:$0xff]
    %v187 = vld [vmem:[%s6] sm:$0x3]
    %v189 = vperm.slane %v187, 0
    %v190 = vperm.slane %v187, 1
    %v209 = vunpack.c.l.b16 %v171
    %v210 = vunpack.c.h.b16 %v171
    %v211 = vunpack.c.l.b16 %v172
    %v212 = vunpack.c.h.b16 %v172
    %v213 = vunpack.c.l.b16 %v173
    %v214 = vunpack.c.h.b16 %v173
    %v215 = vunpack.c.l.b16 %v174
    %v216 = vunpack.c.h.b16 %v174
    %v217 = vunpack.c.l.b16 %v175
    %v218 = vunpack.c.h.b16 %v175
    %v219 = vunpack.c.l.b16 %v176
    %v220 = vunpack.c.h.b16 %v176
    %v221 = vunpack.c.l.b16 %v177
    %v222 = vunpack.c.h.b16 %v177
    %v223 = vunpack.c.l.b16 %v178
    %v224 = vunpack.c.h.b16 %v178
    %v225 = vunpack.c.l.b16 %v179
    %v226 = vunpack.c.h.b16 %v179
    %v227 = vunpack.c.l.b16 %v180
    %v228 = vunpack.c.h.b16 %v180
    %v229 = vunpack.c.l.b16 %v181
    %v230 = vunpack.c.h.b16 %v181
    %v231 = vunpack.c.l.b16 %v182
    %v232 = vunpack.c.h.b16 %v182
    %v233 = vunpack.c.l.b16 %v183
    %v234 = vunpack.c.h.b16 %v183
    %v235 = vunpack.c.l.b16 %v184
    %v236 = vunpack.c.h.b16 %v184
    %v237 = vunpack.c.l.b16 %v185
    %v238 = vunpack.c.h.b16 %v185
    %v239 = vunpack.c.l.b16 %v186
    %v240 = vunpack.c.h.b16 %v186
    %v241 = vpack.c.b16 %v211, %v209
    %v242 = vpack.c.b16 %v212, %v210
    %v243 = vpack.c.b16 %v215, %v213
    %v244 = vpack.c.b16 %v216, %v214
    %v245 = vpack.c.b16 %v219, %v217
    %v246 = vpack.c.b16 %v220, %v218
    %v247 = vpack.c.b16 %v223, %v221
    %v248 = vpack.c.b16 %v224, %v222
    %v249 = vpack.c.b16 %v227, %v225
    %v250 = vpack.c.b16 %v228, %v226
    %v251 = vpack.c.b16 %v231, %v229
    %v252 = vpack.c.b16 %v232, %v230
    %v253 = vpack.c.b16 %v235, %v233
    %v254 = vpack.c.b16 %v236, %v234
    %v255 = vpack.c.b16 %v239, %v237
    %v256 = vpack.c.b16 %v240, %v238
    %273 = vmatpush.bf16.msra.mxu0 %v255
    %274 = vmatpush.bf16.msra.mxu0 %v253
    %275 = vmatpush.bf16.msra.mxu0 %v251
    %276 = vmatpush.bf16.msra.mxu0 %v249
    %277 = vmatpush.bf16.msra.mxu0 %v247
    %278 = vmatpush.bf16.msra.mxu0 %v245
    %279 = vmatpush.bf16.msra.mxu0 %v243
    %280 = vmatpush.bf16.msra.mxu0 %v241
    %281 = vmatmul.bf16.gmra.mxu0 %v170
    %v282 = vpop.f32.mrf.mxu0
    %v283 = vadd.f32 %v189, %v282
    %v284 = vpop.f32.mrf.mxu0
    %285 = vdwg.mxu0
    %286 = vmatpush.bf16.msra.mxu0 %v256
    %287 = vmatpush.bf16.msra.mxu0 %v254
    %288 = vmatpush.bf16.msra.mxu0 %v252
    %289 = vmatpush.bf16.msra.mxu0 %v250
    %290 = vmatpush.bf16.msra.mxu0 %v248
    %291 = vmatpush.bf16.msra.mxu0 %v246
    %292 = vmatpush.bf16.msra.mxu0 %v244
    %293 = vmatpush.bf16.msra.mxu0 %v242
    %294 = vmatmul.bf16.gmra.mxu0 %v170
    %v295 = vpop.f32.mrf.mxu0
    %v296 = vadd.f32 %v190, %v295
    %v297 = vpop.f32.mrf.mxu0
    %298 = vdwg.mxu0
    %v299 = vmul.f32 %v283, 0.1
    %v300 = vmul.f32 %v296, 0.1
    %v301 = vmax.f32 %v283, %v299
    %v302 = vmax.f32 %v296, %v300
    %v303 = vpack.c.bf16 %v301, %v301
    %v304 = vpack.c.bf16 %v302, %v302
    %v305 = vld [vmem:[#allocation5] sm:$0xff]
    %v306 = vld [vmem:[#allocation5 + $0x8] sm:$0xff]
    %v307 = vld [vmem:[#allocation5 + $0x10] sm:$0xff]
    %v308 = vld [vmem:[#allocation5 + $0x18] sm:$0xff]
    %v309 = vld [vmem:[#allocation5 + $0x20] sm:$0xff]
    %v310 = vld [vmem:[#allocation5 + $0x28] sm:$0xff]
    %v311 = vld [vmem:[#allocation5 + $0x30] sm:$0xff]
    %v312 = vld [vmem:[#allocation5 + $0x38] sm:$0xff]
    %v313 = vld [vmem:[#allocation5 + $0x40] sm:$0xff]
    %v314 = vld [vmem:[#allocation5 + $0x48] sm:$0xff]
    %v315 = vld [vmem:[#allocation5 + $0x50] sm:$0xff]
    %v316 = vld [vmem:[#allocation5 + $0x58] sm:$0xff]
    %v317 = vld [vmem:[#allocation5 + $0x60] sm:$0xff]
    %v318 = vld [vmem:[#allocation5 + $0x68] sm:$0xff]
    %v319 = vld [vmem:[#allocation5 + $0x70] sm:$0xff]
    %v320 = vld [vmem:[#allocation5 + $0x78] sm:$0xff]
    %v321 = vld [vmem:[#allocation5 + $0x80] sm:$0xff]
    %v322 = vld [vmem:[#allocation5 + $0x88] sm:$0xff]
    %v323 = vld [vmem:[#allocation5 + $0x90] sm:$0xff]
    %v324 = vld [vmem:[#allocation5 + $0x98] sm:$0xff]
    %v325 = vld [vmem:[#allocation5 + $0xa0] sm:$0xff]
    %v326 = vld [vmem:[#allocation5 + $0xa8] sm:$0xff]
    %v327 = vld [vmem:[#allocation5 + $0xb0] sm:$0xff]
    %v328 = vld [vmem:[#allocation5 + $0xb8] sm:$0xff]
    %v329 = vld [vmem:[#allocation5 + $0xc0] sm:$0xff]
    %v330 = vld [vmem:[#allocation5 + $0xc8] sm:$0xff]
    %v331 = vld [vmem:[#allocation5 + $0xd0] sm:$0xff]
    %v332 = vld [vmem:[#allocation5 + $0xd8] sm:$0xff]
    %v333 = vld [vmem:[#allocation5 + $0xe0] sm:$0xff]
    %v334 = vld [vmem:[#allocation5 + $0xe8] sm:$0xff]
    %v335 = vld [vmem:[#allocation5 + $0xf0] sm:$0xff]
    %v336 = vld [vmem:[#allocation5 + $0xf8] sm:$0xff]
    %v337 = vld [vmem:[#allocation5 + $0x100] sm:$0xff]
    %v338 = vld [vmem:[#allocation5 + $0x108] sm:$0xff]
    %v339 = vld [vmem:[#allocation5 + $0x110] sm:$0xff]
    %v340 = vld [vmem:[#allocation5 + $0x118] sm:$0xff]
    %v341 = vld [vmem:[#allocation5 + $0x120] sm:$0xff]
    %v342 = vld [vmem:[#allocation5 + $0x128] sm:$0xff]
    %v343 = vld [vmem:[#allocation5 + $0x130] sm:$0xff]
    %v344 = vld [vmem:[#allocation5 + $0x138] sm:$0xff]
    %v345 = vld [vmem:[#allocation5 + $0x140] sm:$0xff]
    %v346 = vld [vmem:[#allocation5 + $0x148] sm:$0xff]
    %v347 = vld [vmem:[#allocation5 + $0x150] sm:$0xff]
    %v348 = vld [vmem:[#allocation5 + $0x158] sm:$0xff]
    %v349 = vld [vmem:[#allocation5 + $0x160] sm:$0xff]
    %v350 = vld [vmem:[#allocation5 + $0x168] sm:$0xff]
    %v351 = vld [vmem:[#allocation5 + $0x170] sm:$0xff]
    %v352 = vld [vmem:[#allocation5 + $0x178] sm:$0xff]
    %v353 = vld [vmem:[#allocation5 + $0x180] sm:$0xff]
    %v354 = vld [vmem:[#allocation5 + $0x188] sm:$0xff]
    %v355 = vld [vmem:[#allocation5 + $0x190] sm:$0xff]
    %v356 = vld [vmem:[#allocation5 + $0x198] sm:$0xff]
    %v357 = vld [vmem:[#allocation5 + $0x1a0] sm:$0xff]
    %v358 = vld [vmem:[#allocation5 + $0x1a8] sm:$0xff]
    %v359 = vld [vmem:[#allocation5 + $0x1b0] sm:$0xff]
    %v360 = vld [vmem:[#allocation5 + $0x1b8] sm:$0xff]
    %v361 = vld [vmem:[#allocation5 + $0x1c0] sm:$0xff]
    %v362 = vld [vmem:[#allocation5 + $0x1c8] sm:$0xff]
    %v363 = vld [vmem:[#allocation5 + $0x1d0] sm:$0xff]
    %v364 = vld [vmem:[#allocation5 + $0x1d8] sm:$0xff]
    %v365 = vld [vmem:[#allocation5 + $0x1e0] sm:$0xff]
    %v366 = vld [vmem:[#allocation5 + $0x1e8] sm:$0xff]
    %v367 = vld [vmem:[#allocation5 + $0x1f0] sm:$0xff]
    %v368 = vld [vmem:[#allocation5 + $0x1f8] sm:$0xff]
    %v369 = vld [vmem:[%s8] sm:$0xf]
    %v371 = vperm.slane %v369, 0
    %v372 = vperm.slane %v369, 1
    %v373 = vperm.slane %v369, 2
    %v374 = vperm.slane %v369, 3
    %v443 = vunpack.c.l.b16 %v305
    %v444 = vunpack.c.h.b16 %v305
    %v445 = vunpack.c.l.b16 %v306
    %v446 = vunpack.c.h.b16 %v306
    %v447 = vunpack.c.l.b16 %v307
    %v448 = vunpack.c.h.b16 %v307
    %v449 = vunpack.c.l.b16 %v308
    %v450 = vunpack.c.h.b16 %v308
    %v451 = vunpack.c.l.b16 %v309
    %v452 = vunpack.c.h.b16 %v309
    %v453 = vunpack.c.l.b16 %v310
    %v454 = vunpack.c.h.b16 %v310
    %v455 = vunpack.c.l.b16 %v311
    %v456 = vunpack.c.h.b16 %v311
    %v457 = vunpack.c.l.b16 %v312
    %v458 = vunpack.c.h.b16 %v312
    %v459 = vunpack.c.l.b16 %v313
    %v460 = vunpack.c.h.b16 %v313
    %v461 = vunpack.c.l.b16 %v314
    %v462 = vunpack.c.h.b16 %v314
    %v463 = vunpack.c.l.b16 %v315
    %v464 = vunpack.c.h.b16 %v315
    %v465 = vunpack.c.l.b16 %v316
    %v466 = vunpack.c.h.b16 %v316
    %v467 = vunpack.c.l.b16 %v317
    %v468 = vunpack.c.h.b16 %v317
    %v469 = vunpack.c.l.b16 %v318
    %v470 = vunpack.c.h.b16 %v318
    %v471 = vunpack.c.l.b16 %v319
    %v472 = vunpack.c.h.b16 %v319
    %v473 = vunpack.c.l.b16 %v320
    %v474 = vunpack.c.h.b16 %v320
    %v475 = vunpack.c.l.b16 %v321
    %v476 = vunpack.c.h.b16 %v321
    %v477 = vunpack.c.l.b16 %v322
    %v478 = vunpack.c.h.b16 %v322
    %v479 = vunpack.c.l.b16 %v323
    %v480 = vunpack.c.h.b16 %v323
    %v481 = vunpack.c.l.b16 %v324
    %v482 = vunpack.c.h.b16 %v324
    %v483 = vunpack.c.l.b16 %v325
    %v484 = vunpack.c.h.b16 %v325
    %v485 = vunpack.c.l.b16 %v326
    %v486 = vunpack.c.h.b16 %v326
    %v487 = vunpack.c.l.b16 %v327
    %v488 = vunpack.c.h.b16 %v327
    %v489 = vunpack.c.l.b16 %v328
    %v490 = vunpack.c.h.b16 %v328
    %v491 = vunpack.c.l.b16 %v329
    %v492 = vunpack.c.h.b16 %v329
    %v493 = vunpack.c.l.b16 %v330
    %v494 = vunpack.c.h.b16 %v330
    %v495 = vunpack.c.l.b16 %v331
    %v496 = vunpack.c.h.b16 %v331
    %v497 = vunpack.c.l.b16 %v332
    %v498 = vunpack.c.h.b16 %v332
    %v499 = vunpack.c.l.b16 %v333
    %v500 = vunpack.c.h.b16 %v333
    %v501 = vunpack.c.l.b16 %v334
    %v502 = vunpack.c.h.b16 %v334
    %v503 = vunpack.c.l.b16 %v335
    %v504 = vunpack.c.h.b16 %v335
    %v505 = vunpack.c.l.b16 %v336
    %v506 = vunpack.c.h.b16 %v336
    %v507 = vunpack.c.l.b16 %v337
    %v508 = vunpack.c.h.b16 %v337
    %v509 = vunpack.c.l.b16 %v338
    %v510 = vunpack.c.h.b16 %v338
    %v511 = vunpack.c.l.b16 %v339
    %v512 = vunpack.c.h.b16 %v339
    %v513 = vunpack.c.l.b16 %v340
    %v514 = vunpack.c.h.b16 %v340
    %v515 = vunpack.c.l.b16 %v341
    %v516 = vunpack.c.h.b16 %v341
    %v517 = vunpack.c.l.b16 %v342
    %v518 = vunpack.c.h.b16 %v342
    %v519 = vunpack.c.l.b16 %v343
    %v520 = vunpack.c.h.b16 %v343
    %v521 = vunpack.c.l.b16 %v344
    %v522 = vunpack.c.h.b16 %v344
    %v523 = vunpack.c.l.b16 %v345
    %v524 = vunpack.c.h.b16 %v345
    %v525 = vunpack.c.l.b16 %v346
    %v526 = vunpack.c.h.b16 %v346
    %v527 = vunpack.c.l.b16 %v347
    %v528 = vunpack.c.h.b16 %v347
    %v529 = vunpack.c.l.b16 %v348
    %v530 = vunpack.c.h.b16 %v348
    %v531 = vunpack.c.l.b16 %v349
    %v532 = vunpack.c.h.b16 %v349
    %v533 = vunpack.c.l.b16 %v350
    %v534 = vunpack.c.h.b16 %v350
    %v535 = vunpack.c.l.b16 %v351
    %v536 = vunpack.c.h.b16 %v351
    %v537 = vunpack.c.l.b16 %v352
    %v538 = vunpack.c.h.b16 %v352
    %v539 = vunpack.c.l.b16 %v353
    %v540 = vunpack.c.h.b16 %v353
    %v541 = vunpack.c.l.b16 %v354
    %v542 = vunpack.c.h.b16 %v354
    %v543 = vunpack.c.l.b16 %v355
    %v544 = vunpack.c.h.b16 %v355
    %v545 = vunpack.c.l.b16 %v356
    %v546 = vunpack.c.h.b16 %v356
    %v547 = vunpack.c.l.b16 %v357
    %v548 = vunpack.c.h.b16 %v357
    %v549 = vunpack.c.l.b16 %v358
    %v550 = vunpack.c.h.b16 %v358
    %v551 = vunpack.c.l.b16 %v359
    %v552 = vunpack.c.h.b16 %v359
    %v553 = vunpack.c.l.b16 %v360
    %v554 = vunpack.c.h.b16 %v360
    %v555 = vunpack.c.l.b16 %v361
    %v556 = vunpack.c.h.b16 %v361
    %v557 = vunpack.c.l.b16 %v362
    %v558 = vunpack.c.h.b16 %v362
    %v559 = vunpack.c.l.b16 %v363
    %v560 = vunpack.c.h.b16 %v363
    %v561 = vunpack.c.l.b16 %v364
    %v562 = vunpack.c.h.b16 %v364
    %v563 = vunpack.c.l.b16 %v365
    %v564 = vunpack.c.h.b16 %v365
    %v565 = vunpack.c.l.b16 %v366
    %v566 = vunpack.c.h.b16 %v366
    %v567 = vunpack.c.l.b16 %v367
    %v568 = vunpack.c.h.b16 %v367
    %v569 = vunpack.c.l.b16 %v368
    %v570 = vunpack.c.h.b16 %v368
    %v571 = vpack.c.b16 %v447, %v443
    %v572 = vpack.c.b16 %v448, %v444
    %v573 = vpack.c.b16 %v449, %v445
    %v574 = vpack.c.b16 %v450, %v446
    %v575 = vpack.c.b16 %v455, %v451
    %v576 = vpack.c.b16 %v456, %v452
    %v577 = vpack.c.b16 %v457, %v453
    %v578 = vpack.c.b16 %v458, %v454
    %v579 = vpack.c.b16 %v463, %v459
    %v580 = vpack.c.b16 %v464, %v460
    %v581 = vpack.c.b16 %v465, %v461
    %v582 = vpack.c.b16 %v466, %v462
    %v583 = vpack.c.b16 %v471, %v467
    %v584 = vpack.c.b16 %v472, %v468
    %v585 = vpack.c.b16 %v473, %v469
    %v586 = vpack.c.b16 %v474, %v470
    %v587 = vpack.c.b16 %v479, %v475
    %v588 = vpack.c.b16 %v480, %v476
    %v589 = vpack.c.b16 %v481, %v477
    %v590 = vpack.c.b16 %v482, %v478
    %v591 = vpack.c.b16 %v487, %v483
    %v592 = vpack.c.b16 %v488, %v484
    %v593 = vpack.c.b16 %v489, %v485
    %v594 = vpack.c.b16 %v490, %v486
    %v595 = vpack.c.b16 %v495, %v491
    %v596 = vpack.c.b16 %v496, %v492
    %v597 = vpack.c.b16 %v497, %v493
    %v598 = vpack.c.b16 %v498, %v494
    %v599 = vpack.c.b16 %v503, %v499
    %v600 = vpack.c.b16 %v504, %v500
    %v601 = vpack.c.b16 %v505, %v501
    %v602 = vpack.c.b16 %v506, %v502
    %v603 = vpack.c.b16 %v511, %v507
    %v604 = vpack.c.b16 %v512, %v508
    %v605 = vpack.c.b16 %v513, %v509
    %v606 = vpack.c.b16 %v514, %v510
    %v607 = vpack.c.b16 %v519, %v515
    %v608 = vpack.c.b16 %v520, %v516
    %v609 = vpack.c.b16 %v521, %v517
    %v610 = vpack.c.b16 %v522, %v518
    %v611 = vpack.c.b16 %v527, %v523
    %v612 = vpack.c.b16 %v528, %v524
    %v613 = vpack.c.b16 %v529, %v525
    %v614 = vpack.c.b16 %v530, %v526
    %v615 = vpack.c.b16 %v535, %v531
    %v616 = vpack.c.b16 %v536, %v532
    %v617 = vpack.c.b16 %v537, %v533
    %v618 = vpack.c.b16 %v538, %v534
    %v619 = vpack.c.b16 %v543, %v539
    %v620 = vpack.c.b16 %v544, %v540
    %v621 = vpack.c.b16 %v545, %v541
    %v622 = vpack.c.b16 %v546, %v542
    %v623 = vpack.c.b16 %v551, %v547
    %v624 = vpack.c.b16 %v552, %v548
    %v625 = vpack.c.b16 %v553, %v549
    %v626 = vpack.c.b16 %v554, %v550
    %v627 = vpack.c.b16 %v559, %v555
    %v628 = vpack.c.b16 %v560, %v556
    %v629 = vpack.c.b16 %v561, %v557
    %v630 = vpack.c.b16 %v562, %v558
    %v631 = vpack.c.b16 %v567, %v563
    %v632 = vpack.c.b16 %v568, %v564
    %v633 = vpack.c.b16 %v569, %v565
    %v634 = vpack.c.b16 %v570, %v566
    %699 = vmatpush.bf16.msra.mxu0 %v599
    %700 = vmatpush.bf16.msra.mxu0 %v595
    %701 = vmatpush.bf16.msra.mxu0 %v591
    %702 = vmatpush.bf16.msra.mxu0 %v587
    %703 = vmatpush.bf16.msra.mxu0 %v583
    %704 = vmatpush.bf16.msra.mxu0 %v579
    %705 = vmatpush.bf16.msra.mxu0 %v575
    %706 = vmatpush.bf16.msra.mxu0 %v571
    %707 = vmatmul.bf16.gmra.mxu0 %v303
    %v708 = vpop.f32.mrf.mxu0
    %v709 = vadd.f32 %v371, %v708
    %v710 = vpop.f32.mrf.mxu0
    %711 = vdwg.mxu0
    %712 = vmatpush.bf16.msra.mxu0 %v631
    %713 = vmatpush.bf16.msra.mxu0 %v627
    %714 = vmatpush.bf16.msra.mxu0 %v623
    %715 = vmatpush.bf16.msra.mxu0 %v619
    %716 = vmatpush.bf16.msra.mxu0 %v615
    %717 = vmatpush.bf16.msra.mxu0 %v611
    %718 = vmatpush.bf16.msra.mxu0 %v607
    %719 = vmatpush.bf16.msra.mxu0 %v603
    %720 = vmatmul.bf16.gmra.mxu0 %v304
    %v721 = vpop.f32.mrf.mxu0
    %v722 = vadd.f32 %v709, %v721
    %v723 = vpop.f32.mrf.mxu0
    %724 = vdwg.mxu0
    %725 = vmatpush.bf16.msra.mxu0 %v600
    %726 = vmatpush.bf16.msra.mxu0 %v596
    %727 = vmatpush.bf16.msra.mxu0 %v592
    %728 = vmatpush.bf16.msra.mxu0 %v588
    %729 = vmatpush.bf16.msra.mxu0 %v584
    %730 = vmatpush.bf16.msra.mxu0 %v580
    %731 = vmatpush.bf16.msra.mxu0 %v576
    %732 = vmatpush.bf16.msra.mxu0 %v572
    %733 = vmatmul.bf16.gmra.mxu0 %v303
    %v734 = vpop.f32.mrf.mxu0
    %v735 = vadd.f32 %v372, %v734
    %v736 = vpop.f32.mrf.mxu0
    %737 = vdwg.mxu0
    %738 = vmatpush.bf16.msra.mxu0 %v632
    %739 = vmatpush.bf16.msra.mxu0 %v628
    %740 = vmatpush.bf16.msra.mxu0 %v624
    %741 = vmatpush.bf16.msra.mxu0 %v620
    %742 = vmatpush.bf16.msra.mxu0 %v616
    %743 = vmatpush.bf16.msra.mxu0 %v612
    %744 = vmatpush.bf16.msra.mxu0 %v608
    %745 = vmatpush.bf16.msra.mxu0 %v604
    %746 = vmatmul.bf16.gmra.mxu0 %v304
    %v747 = vpop.f32.mrf.mxu0
    %v748 = vadd.f32 %v735, %v747
    %v749 = vpop.f32.mrf.mxu0
    %750 = vdwg.mxu0
    %751 = vmatpush.bf16.msra.mxu0 %v601
    %752 = vmatpush.bf16.msra.mxu0 %v597
    %753 = vmatpush.bf16.msra.mxu0 %v593
    %754 = vmatpush.bf16.msra.mxu0 %v589
    %755 = vmatpush.bf16.msra.mxu0 %v585
    %756 = vmatpush.bf16.msra.mxu0 %v581
    %757 = vmatpush.bf16.msra.mxu0 %v577
    %758 = vmatpush.bf16.msra.mxu0 %v573
    %759 = vmatmul.bf16.gmra.mxu0 %v303
    %v760 = vpop.f32.mrf.mxu0
    %v761 = vadd.f32 %v373, %v760
    %v762 = vpop.f32.mrf.mxu0
    %763 = vdwg.mxu0
    %764 = vmatpush.bf16.msra.mxu0 %v633
    %765 = vmatpush.bf16.msra.mxu0 %v629
    %766 = vmatpush.bf16.msra.mxu0 %v625
    %767 = vmatpush.bf16.msra.mxu0 %v621
    %768 = vmatpush.bf16.msra.mxu0 %v617
    %769 = vmatpush.bf16.msra.mxu0 %v613
    %770 = vmatpush.bf16.msra.mxu0 %v609
    %771 = vmatpush.bf16.msra.mxu0 %v605
    %772 = vmatmul.bf16.gmra.mxu0 %v304
    %v773 = vpop.f32.mrf.mxu0
    %v774 = vadd.f32 %v761, %v773
    %v775 = vpop.f32.mrf.mxu0
    %776 = vdwg.mxu0
    %777 = vmatpush.bf16.msra.mxu0 %v602
    %778 = vmatpush.bf16.msra.mxu0 %v598
    %779 = vmatpush.bf16.msra.mxu0 %v594
    %780 = vmatpush.bf16.msra.mxu0 %v590
    %781 = vmatpush.bf16.msra.mxu0 %v586
    %782 = vmatpush.bf16.msra.mxu0 %v582
    %783 = vmatpush.bf16.msra.mxu0 %v578
    %784 = vmatpush.bf16.msra.mxu0 %v574
    %785 = vmatmul.bf16.gmra.mxu0 %v303
    %v786 = vpop.f32.mrf.mxu0
    %v787 = vadd.f32 %v374, %v786
    %v788 = vpop.f32.mrf.mxu0
    %789 = vdwg.mxu0
    %790 = vmatpush.bf16.msra.mxu0 %v634
    %791 = vmatpush.bf16.msra.mxu0 %v630
    %792 = vmatpush.bf16.msra.mxu0 %v626
    %793 = vmatpush.bf16.msra.mxu0 %v622
    %794 = vmatpush.bf16.msra.mxu0 %v618
    %795 = vmatpush.bf16.msra.mxu0 %v614
    %796 = vmatpush.bf16.msra.mxu0 %v610
    %797 = vmatpush.bf16.msra.mxu0 %v606
    %798 = vmatmul.bf16.gmra.mxu0 %v304
    %v799 = vpop.f32.mrf.mxu0
    %v800 = vadd.f32 %v787, %v799
    %v801 = vpop.f32.mrf.mxu0
    %802 = vdwg.mxu0
    %v803 = vmul.f32 %v722, 0.1
    %v804 = vmul.f32 %v748, 0.1
    %v805 = vmul.f32 %v774, 0.1
    %v806 = vmul.f32 %v800, 0.1
    %v807 = vmax.f32 %v722, %v803
    %v808 = vmax.f32 %v748, %v804
    %v809 = vmax.f32 %v774, %v805
    %v810 = vmax.f32 %v800, %v806
    %v811 = vpack.c.bf16 %v807, %v807
    %v812 = vpack.c.bf16 %v808, %v808
    %v813 = vpack.c.bf16 %v809, %v809
    %v814 = vpack.c.bf16 %v810, %v810
    %v815 = vld [vmem:[#allocation7] sm:$0xff]
    %v816 = vld [vmem:[#allocation7 + $0x8] sm:$0xff]
    %v817 = vld [vmem:[#allocation7 + $0x10] sm:$0xff]
    %v818 = vld [vmem:[#allocation7 + $0x18] sm:$0xff]
    %v819 = vld [vmem:[#allocation7 + $0x20] sm:$0xff]
    %v820 = vld [vmem:[#allocation7 + $0x28] sm:$0xff]
    %v821 = vld [vmem:[#allocation7 + $0x30] sm:$0xff]
    %v822 = vld [vmem:[#allocation7 + $0x38] sm:$0xff]
    %v823 = vld [vmem:[#allocation7 + $0x40] sm:$0xff]
    %v824 = vld [vmem:[#allocation7 + $0x48] sm:$0xff]
    %v825 = vld [vmem:[#allocation7 + $0x50] sm:$0xff]
    %v826 = vld [vmem:[#allocation7 + $0x58] sm:$0xff]
    %v827 = vld [vmem:[#allocation7 + $0x60] sm:$0xff]
    %v828 = vld [vmem:[#allocation7 + $0x68] sm:$0xff]
    %v829 = vld [vmem:[#allocation7 + $0x70] sm:$0xff]
    %v830 = vld [vmem:[#allocation7 + $0x78] sm:$0xff]
    %v831 = vld [vmem:[#allocation7 + $0x80] sm:$0xff]
    %v832 = vld [vmem:[#allocation7 + $0x88] sm:$0xff]
    %v833 = vld [vmem:[#allocation7 + $0x90] sm:$0xff]
    %v834 = vld [vmem:[#allocation7 + $0x98] sm:$0xff]
    %v835 = vld [vmem:[#allocation7 + $0xa0] sm:$0xff]
    %v836 = vld [vmem:[#allocation7 + $0xa8] sm:$0xff]
    %v837 = vld [vmem:[#allocation7 + $0xb0] sm:$0xff]
    %v838 = vld [vmem:[#allocation7 + $0xb8] sm:$0xff]
    %v839 = vld [vmem:[#allocation7 + $0xc0] sm:$0xff]
    %v840 = vld [vmem:[#allocation7 + $0xc8] sm:$0xff]
    %v841 = vld [vmem:[#allocation7 + $0xd0] sm:$0xff]
    %v842 = vld [vmem:[#allocation7 + $0xd8] sm:$0xff]
    %v843 = vld [vmem:[#allocation7 + $0xe0] sm:$0xff]
    %v844 = vld [vmem:[#allocation7 + $0xe8] sm:$0xff]
    %v845 = vld [vmem:[#allocation7 + $0xf0] sm:$0xff]
    %v846 = vld [vmem:[#allocation7 + $0xf8] sm:$0xff]
    %v847 = vld [vmem:[#allocation7 + $0x100] sm:$0xff]
    %v848 = vld [vmem:[#allocation7 + $0x108] sm:$0xff]
    %v849 = vld [vmem:[#allocation7 + $0x110] sm:$0xff]
    %v850 = vld [vmem:[#allocation7 + $0x118] sm:$0xff]
    %v851 = vld [vmem:[#allocation7 + $0x120] sm:$0xff]
    %v852 = vld [vmem:[#allocation7 + $0x128] sm:$0xff]
    %v853 = vld [vmem:[#allocation7 + $0x130] sm:$0xff]
    %v854 = vld [vmem:[#allocation7 + $0x138] sm:$0xff]
    %v855 = vld [vmem:[#allocation7 + $0x140] sm:$0xff]
    %v856 = vld [vmem:[#allocation7 + $0x148] sm:$0xff]
    %v857 = vld [vmem:[#allocation7 + $0x150] sm:$0xff]
    %v858 = vld [vmem:[#allocation7 + $0x158] sm:$0xff]
    %v859 = vld [vmem:[#allocation7 + $0x160] sm:$0xff]
    %v860 = vld [vmem:[#allocation7 + $0x168] sm:$0xff]
    %v861 = vld [vmem:[#allocation7 + $0x170] sm:$0xff]
    %v862 = vld [vmem:[#allocation7 + $0x178] sm:$0xff]
    %v863 = vld [vmem:[#allocation7 + $0x180] sm:$0xff]
    %v864 = vld [vmem:[#allocation7 + $0x188] sm:$0xff]
    %v865 = vld [vmem:[#allocation7 + $0x190] sm:$0xff]
    %v866 = vld [vmem:[#allocation7 + $0x198] sm:$0xff]
    %v867 = vld [vmem:[#allocation7 + $0x1a0] sm:$0xff]
    %v868 = vld [vmem:[#allocation7 + $0x1a8] sm:$0xff]
    %v869 = vld [vmem:[#allocation7 + $0x1b0] sm:$0xff]
    %v870 = vld [vmem:[#allocation7 + $0x1b8] sm:$0xff]
    %v871 = vld [vmem:[#allocation7 + $0x1c0] sm:$0xff]
    %v872 = vld [vmem:[#allocation7 + $0x1c8] sm:$0xff]
    %v873 = vld [vmem:[#allocation7 + $0x1d0] sm:$0xff]
    %v874 = vld [vmem:[#allocation7 + $0x1d8] sm:$0xff]
    %v875 = vld [vmem:[#allocation7 + $0x1e0] sm:$0xff]
    %v876 = vld [vmem:[#allocation7 + $0x1e8] sm:$0xff]
    %v877 = vld [vmem:[#allocation7 + $0x1f0] sm:$0xff]
    %v878 = vld [vmem:[#allocation7 + $0x1f8] sm:$0xff]
    %v879 = vld [vmem:[%s10] sm:$0x3]
    %v881 = vperm.slane %v879, 0
    %v882 = vperm.slane %v879, 1
    %v949 = vunpack.c.l.b16 %v815
    %v950 = vunpack.c.h.b16 %v815
    %v951 = vunpack.c.l.b16 %v816
    %v952 = vunpack.c.h.b16 %v816
    %v953 = vunpack.c.l.b16 %v817
    %v954 = vunpack.c.h.b16 %v817
    %v955 = vunpack.c.l.b16 %v818
    %v956 = vunpack.c.h.b16 %v818
    %v957 = vunpack.c.l.b16 %v819
    %v958 = vunpack.c.h.b16 %v819
    %v959 = vunpack.c.l.b16 %v820
    %v960 = vunpack.c.h.b16 %v820
    %v961 = vunpack.c.l.b16 %v821
    %v962 = vunpack.c.h.b16 %v821
    %v963 = vunpack.c.l.b16 %v822
    %v964 = vunpack.c.h.b16 %v822
    %v965 = vunpack.c.l.b16 %v823
    %v966 = vunpack.c.h.b16 %v823
    %v967 = vunpack.c.l.b16 %v824
    %v968 = vunpack.c.h.b16 %v824
    %v969 = vunpack.c.l.b16 %v825
    %v970 = vunpack.c.h.b16 %v825
    %v971 = vunpack.c.l.b16 %v826
    %v972 = vunpack.c.h.b16 %v826
    %v973 = vunpack.c.l.b16 %v827
    %v974 = vunpack.c.h.b16 %v827
    %v975 = vunpack.c.l.b16 %v828
    %v976 = vunpack.c.h.b16 %v828
    %v977 = vunpack.c.l.b16 %v829
    %v978 = vunpack.c.h.b16 %v829
    %v979 = vunpack.c.l.b16 %v830
    %v980 = vunpack.c.h.b16 %v830
    %v981 = vunpack.c.l.b16 %v831
    %v982 = vunpack.c.h.b16 %v831
    %v983 = vunpack.c.l.b16 %v832
    %v984 = vunpack.c.h.b16 %v832
    %v985 = vunpack.c.l.b16 %v833
    %v986 = vunpack.c.h.b16 %v833
    %v987 = vunpack.c.l.b16 %v834
    %v988 = vunpack.c.h.b16 %v834
    %v989 = vunpack.c.l.b16 %v835
    %v990 = vunpack.c.h.b16 %v835
    %v991 = vunpack.c.l.b16 %v836
    %v992 = vunpack.c.h.b16 %v836
    %v993 = vunpack.c.l.b16 %v837
    %v994 = vunpack.c.h.b16 %v837
    %v995 = vunpack.c.l.b16 %v838
    %v996 = vunpack.c.h.b16 %v838
    %v997 = vunpack.c.l.b16 %v839
    %v998 = vunpack.c.h.b16 %v839
    %v999 = vunpack.c.l.b16 %v840
    %v1000 = vunpack.c.h.b16 %v840
    %v1001 = vunpack.c.l.b16 %v841
    %v1002 = vunpack.c.h.b16 %v841
    %v1003 = vunpack.c.l.b16 %v842
    %v1004 = vunpack.c.h.b16 %v842
    %v1005 = vunpack.c.l.b16 %v843
    %v1006 = vunpack.c.h.b16 %v843
    %v1007 = vunpack.c.l.b16 %v844
    %v1008 = vunpack.c.h.b16 %v844
    %v1009 = vunpack.c.l.b16 %v845
    %v1010 = vunpack.c.h.b16 %v845
    %v1011 = vunpack.c.l.b16 %v846
    %v1012 = vunpack.c.h.b16 %v846
    %v1013 = vunpack.c.l.b16 %v847
    %v1014 = vunpack.c.h.b16 %v847
    %v1015 = vunpack.c.l.b16 %v848
    %v1016 = vunpack.c.h.b16 %v848
    %v1017 = vunpack.c.l.b16 %v849
    %v1018 = vunpack.c.h.b16 %v849
    %v1019 = vunpack.c.l.b16 %v850
    %v1020 = vunpack.c.h.b16 %v850
    %v1021 = vunpack.c.l.b16 %v851
    %v1022 = vunpack.c.h.b16 %v851
    %v1023 = vunpack.c.l.b16 %v852
    %v1024 = vunpack.c.h.b16 %v852
    %v1025 = vunpack.c.l.b16 %v853
    %v1026 = vunpack.c.h.b16 %v853
    %v1027 = vunpack.c.l.b16 %v854
    %v1028 = vunpack.c.h.b16 %v854
    %v1029 = vunpack.c.l.b16 %v855
    %v1030 = vunpack.c.h.b16 %v855
    %v1031 = vunpack.c.l.b16 %v856
    %v1032 = vunpack.c.h.b16 %v856
    %v1033 = vunpack.c.l.b16 %v857
    %v1034 = vunpack.c.h.b16 %v857
    %v1035 = vunpack.c.l.b16 %v858
    %v1036 = vunpack.c.h.b16 %v858
    %v1037 = vunpack.c.l.b16 %v859
    %v1038 = vunpack.c.h.b16 %v859
    %v1039 = vunpack.c.l.b16 %v860
    %v1040 = vunpack.c.h.b16 %v860
    %v1041 = vunpack.c.l.b16 %v861
    %v1042 = vunpack.c.h.b16 %v861
    %v1043 = vunpack.c.l.b16 %v862
    %v1044 = vunpack.c.h.b16 %v862
    %v1045 = vunpack.c.l.b16 %v863
    %v1046 = vunpack.c.h.b16 %v863
    %v1047 = vunpack.c.l.b16 %v864
    %v1048 = vunpack.c.h.b16 %v864
    %v1049 = vunpack.c.l.b16 %v865
    %v1050 = vunpack.c.h.b16 %v865
    %v1051 = vunpack.c.l.b16 %v866
    %v1052 = vunpack.c.h.b16 %v866
    %v1053 = vunpack.c.l.b16 %v867
    %v1054 = vunpack.c.h.b16 %v867
    %v1055 = vunpack.c.l.b16 %v868
    %v1056 = vunpack.c.h.b16 %v868
    %v1057 = vunpack.c.l.b16 %v869
    %v1058 = vunpack.c.h.b16 %v869
    %v1059 = vunpack.c.l.b16 %v870
    %v1060 = vunpack.c.h.b16 %v870
    %v1061 = vunpack.c.l.b16 %v871
    %v1062 = vunpack.c.h.b16 %v871
    %v1063 = vunpack.c.l.b16 %v872
    %v1064 = vunpack.c.h.b16 %v872
    %v1065 = vunpack.c.l.b16 %v873
    %v1066 = vunpack.c.h.b16 %v873
    %v1067 = vunpack.c.l.b16 %v874
    %v1068 = vunpack.c.h.b16 %v874
    %v1069 = vunpack.c.l.b16 %v875
    %v1070 = vunpack.c.h.b16 %v875
    %v1071 = vunpack.c.l.b16 %v876
    %v1072 = vunpack.c.h.b16 %v876
    %v1073 = vunpack.c.l.b16 %v877
    %v1074 = vunpack.c.h.b16 %v877
    %v1075 = vunpack.c.l.b16 %v878
    %v1076 = vunpack.c.h.b16 %v878
    %v1077 = vpack.c.b16 %v951, %v949
    %v1078 = vpack.c.b16 %v952, %v950
    %v1079 = vpack.c.b16 %v955, %v953
    %v1080 = vpack.c.b16 %v956, %v954
    %v1081 = vpack.c.b16 %v959, %v957
    %v1082 = vpack.c.b16 %v960, %v958
    %v1083 = vpack.c.b16 %v963, %v961
    %v1084 = vpack.c.b16 %v964, %v962
    %v1085 = vpack.c.b16 %v967, %v965
    %v1086 = vpack.c.b16 %v968, %v966
    %v1087 = vpack.c.b16 %v971, %v969
    %v1088 = vpack.c.b16 %v972, %v970
    %v1089 = vpack.c.b16 %v975, %v973
    %v1090 = vpack.c.b16 %v976, %v974
    %v1091 = vpack.c.b16 %v979, %v977
    %v1092 = vpack.c.b16 %v980, %v978
    %v1093 = vpack.c.b16 %v983, %v981
    %v1094 = vpack.c.b16 %v984, %v982
    %v1095 = vpack.c.b16 %v987, %v985
    %v1096 = vpack.c.b16 %v988, %v986
    %v1097 = vpack.c.b16 %v991, %v989
    %v1098 = vpack.c.b16 %v992, %v990
    %v1099 = vpack.c.b16 %v995, %v993
    %v1100 = vpack.c.b16 %v996, %v994
    %v1101 = vpack.c.b16 %v999, %v997
    %v1102 = vpack.c.b16 %v1000, %v998
    %v1103 = vpack.c.b16 %v1003, %v1001
    %v1104 = vpack.c.b16 %v1004, %v1002
    %v1105 = vpack.c.b16 %v1007, %v1005
    %v1106 = vpack.c.b16 %v1008, %v1006
    %v1107 = vpack.c.b16 %v1011, %v1009
    %v1108 = vpack.c.b16 %v1012, %v1010
    %v1109 = vpack.c.b16 %v1015, %v1013
    %v1110 = vpack.c.b16 %v1016, %v1014
    %v1111 = vpack.c.b16 %v1019, %v1017
    %v1112 = vpack.c.b16 %v1020, %v1018
    %v1113 = vpack.c.b16 %v1023, %v1021
    %v1114 = vpack.c.b16 %v1024, %v1022
    %v1115 = vpack.c.b16 %v1027, %v1025
    %v1116 = vpack.c.b16 %v1028, %v1026
    %v1117 = vpack.c.b16 %v1031, %v1029
    %v1118 = vpack.c.b16 %v1032, %v1030
    %v1119 = vpack.c.b16 %v1035, %v1033
    %v1120 = vpack.c.b16 %v1036, %v1034
    %v1121 = vpack.c.b16 %v1039, %v1037
    %v1122 = vpack.c.b16 %v1040, %v1038
    %v1123 = vpack.c.b16 %v1043, %v1041
    %v1124 = vpack.c.b16 %v1044, %v1042
    %v1125 = vpack.c.b16 %v1047, %v1045
    %v1126 = vpack.c.b16 %v1048, %v1046
    %v1127 = vpack.c.b16 %v1051, %v1049
    %v1128 = vpack.c.b16 %v1052, %v1050
    %v1129 = vpack.c.b16 %v1055, %v1053
    %v1130 = vpack.c.b16 %v1056, %v1054
    %v1131 = vpack.c.b16 %v1059, %v1057
    %v1132 = vpack.c.b16 %v1060, %v1058
    %v1133 = vpack.c.b16 %v1063, %v1061
    %v1134 = vpack.c.b16 %v1064, %v1062
    %v1135 = vpack.c.b16 %v1067, %v1065
    %v1136 = vpack.c.b16 %v1068, %v1066
    %v1137 = vpack.c.b16 %v1071, %v1069
    %v1138 = vpack.c.b16 %v1072, %v1070
    %v1139 = vpack.c.b16 %v1075, %v1073
    %v1140 = vpack.c.b16 %v1076, %v1074
    %1205 = vmatpush.bf16.msra.mxu0 %v1091
    %1206 = vmatpush.bf16.msra.mxu0 %v1089
    %1207 = vmatpush.bf16.msra.mxu0 %v1087
    %1208 = vmatpush.bf16.msra.mxu0 %v1085
    %1209 = vmatpush.bf16.msra.mxu0 %v1083
    %1210 = vmatpush.bf16.msra.mxu0 %v1081
    %1211 = vmatpush.bf16.msra.mxu0 %v1079
    %1212 = vmatpush.bf16.msra.mxu0 %v1077
    %1213 = vmatmul.bf16.gmra.mxu0 %v811
    %v1214 = vpop.f32.mrf.mxu0
    %v1215 = vadd.f32 %v881, %v1214
    %v1216 = vpop.f32.mrf.mxu0
    %1217 = vdwg.mxu0
    %1218 = vmatpush.bf16.msra.mxu0 %v1107
    %1219 = vmatpush.bf16.msra.mxu0 %v1105
    %1220 = vmatpush.bf16.msra.mxu0 %v1103
    %1221 = vmatpush.bf16.msra.mxu0 %v1101
    %1222 = vmatpush.bf16.msra.mxu0 %v1099
    %1223 = vmatpush.bf16.msra.mxu0 %v1097
    %1224 = vmatpush.bf16.msra.mxu0 %v1095
    %1225 = vmatpush.bf16.msra.mxu0 %v1093
    %1226 = vmatmul.bf16.gmra.mxu0 %v812
    %v1227 = vpop.f32.mrf.mxu0
    %v1228 = vadd.f32 %v1215, %v1227
    %v1229 = vpop.f32.mrf.mxu0
    %1230 = vdwg.mxu0
    %1231 = vmatpush.bf16.msra.mxu0 %v1123
    %1232 = vmatpush.bf16.msra.mxu0 %v1121
    %1233 = vmatpush.bf16.msra.mxu0 %v1119
    %1234 = vmatpush.bf16.msra.mxu0 %v1117
    %1235 = vmatpush.bf16.msra.mxu0 %v1115
    %1236 = vmatpush.bf16.msra.mxu0 %v1113
    %1237 = vmatpush.bf16.msra.mxu0 %v1111
    %1238 = vmatpush.bf16.msra.mxu0 %v1109
    %1239 = vmatmul.bf16.gmra.mxu0 %v813
    %v1240 = vpop.f32.mrf.mxu0
    %v1241 = vadd.f32 %v1228, %v1240
    %v1242 = vpop.f32.mrf.mxu0
    %1243 = vdwg.mxu0
    %1244 = vmatpush.bf16.msra.mxu0 %v1139
    %1245 = vmatpush.bf16.msra.mxu0 %v1137
    %1246 = vmatpush.bf16.msra.mxu0 %v1135
    %1247 = vmatpush.bf16.msra.mxu0 %v1133
    %1248 = vmatpush.bf16.msra.mxu0 %v1131
    %1249 = vmatpush.bf16.msra.mxu0 %v1129
    %1250 = vmatpush.bf16.msra.mxu0 %v1127
    %1251 = vmatpush.bf16.msra.mxu0 %v1125
    %1252 = vmatmul.bf16.gmra.mxu0 %v814
    %v1253 = vpop.f32.mrf.mxu0
    %v1254 = vadd.f32 %v1241, %v1253
    %v1255 = vpop.f32.mrf.mxu0
    %1256 = vdwg.mxu0
    %1257 = vmatpush.bf16.msra.mxu0 %v1092
    %1258 = vmatpush.bf16.msra.mxu0 %v1090
    %1259 = vmatpush.bf16.msra.mxu0 %v1088
    %1260 = vmatpush.bf16.msra.mxu0 %v1086
    %1261 = vmatpush.bf16.msra.mxu0 %v1084
    %1262 = vmatpush.bf16.msra.mxu0 %v1082
    %1263 = vmatpush.bf16.msra.mxu0 %v1080
    %1264 = vmatpush.bf16.msra.mxu0 %v1078
    %1265 = vmatmul.bf16.gmra.mxu0 %v811
    %v1266 = vpop.f32.mrf.mxu0
    %v1267 = vadd.f32 %v882, %v1266
    %v1268 = vpop.f32.mrf.mxu0
    %1269 = vdwg.mxu0
    %1270 = vmatpush.bf16.msra.mxu0 %v1108
    %1271 = vmatpush.bf16.msra.mxu0 %v1106
    %1272 = vmatpush.bf16.msra.mxu0 %v1104
    %1273 = vmatpush.bf16.msra.mxu0 %v1102
    %1274 = vmatpush.bf16.msra.mxu0 %v1100
    %1275 = vmatpush.bf16.msra.mxu0 %v1098
    %1276 = vmatpush.bf16.msra.mxu0 %v1096
    %1277 = vmatpush.bf16.msra.mxu0 %v1094
    %1278 = vmatmul.bf16.gmra.mxu0 %v812
    %v1279 = vpop.f32.mrf.mxu0
    %v1280 = vadd.f32 %v1267, %v1279
    %v1281 = vpop.f32.mrf.mxu0
    %1282 = vdwg.mxu0
    %1283 = vmatpush.bf16.msra.mxu0 %v1124
    %1284 = vmatpush.bf16.msra.mxu0 %v1122
    %1285 = vmatpush.bf16.msra.mxu0 %v1120
    %1286 = vmatpush.bf16.msra.mxu0 %v1118
    %1287 = vmatpush.bf16.msra.mxu0 %v1116
    %1288 = vmatpush.bf16.msra.mxu0 %v1114
    %1289 = vmatpush.bf16.msra.mxu0 %v1112
    %1290 = vmatpush.bf16.msra.mxu0 %v1110
    %1291 = vmatmul.bf16.gmra.mxu0 %v813
    %v1292 = vpop.f32.mrf.mxu0
    %v1293 = vadd.f32 %v1280, %v1292
    %v1294 = vpop.f32.mrf.mxu0
    %1295 = vdwg.mxu0
    %1296 = vmatpush.bf16.msra.mxu0 %v1140
    %1297 = vmatpush.bf16.msra.mxu0 %v1138
    %1298 = vmatpush.bf16.msra.mxu0 %v1136
    %1299 = vmatpush.bf16.msra.mxu0 %v1134
    %1300 = vmatpush.bf16.msra.mxu0 %v1132
    %1301 = vmatpush.bf16.msra.mxu0 %v1130
    %1302 = vmatpush.bf16.msra.mxu0 %v1128
    %1303 = vmatpush.bf16.msra.mxu0 %v1126
    %1304 = vmatmul.bf16.gmra.mxu0 %v814
    %v1305 = vpop.f32.mrf.mxu0
    %v1306 = vadd.f32 %v1293, %v1305
    %v1307 = vpop.f32.mrf.mxu0
    %1308 = vdwg.mxu0
    %v1309 = vmul.f32 %v1254, 0.1
    %v1310 = vmul.f32 %v1306, 0.1
    %v1311 = vmax.f32 %v1254, %v1309
    %v1312 = vmax.f32 %v1306, %v1310
    %v1313 = vpack.c.bf16 %v1311, %v1311
    %v1314 = vpack.c.bf16 %v1312, %v1312
    %v1315 = vld [vmem:[#allocation8] sm:$0xf]
    %v1316 = vld [vmem:[#allocation8 + $0x4] sm:$0xf]
    %v1317 = vld [vmem:[#allocation8 + $0x8] sm:$0xf]
    %v1318 = vld [vmem:[#allocation8 + $0xc] sm:$0xf]
    %v1319 = vld [vmem:[#allocation8 + $0x10] sm:$0xf]
    %v1320 = vld [vmem:[#allocation8 + $0x14] sm:$0xf]
    %v1321 = vld [vmem:[#allocation8 + $0x18] sm:$0xf]
    %v1322 = vld [vmem:[#allocation8 + $0x1c] sm:$0xf]
    %v1323 = vld [vmem:[#allocation8 + $0x20] sm:$0xf]
    %v1324 = vld [vmem:[#allocation8 + $0x24] sm:$0xf]
    %v1325 = vld [vmem:[#allocation8 + $0x28] sm:$0xf]
    %v1326 = vld [vmem:[#allocation8 + $0x2c] sm:$0xf]
    %v1327 = vld [vmem:[#allocation8 + $0x30] sm:$0xf]
    %v1328 = vld [vmem:[#allocation8 + $0x34] sm:$0xf]
    %v1329 = vld [vmem:[#allocation8 + $0x38] sm:$0xf]
    %v1330 = vld [vmem:[#allocation8 + $0x3c] sm:$0xf]
    %v1331 = vld [vmem:[#allocation8 + $0x40] sm:$0xf]
    %v1332 = vld [vmem:[#allocation8 + $0x44] sm:$0xf]
    %v1333 = vld [vmem:[#allocation8 + $0x48] sm:$0xf]
    %v1334 = vld [vmem:[#allocation8 + $0x4c] sm:$0xf]
    %v1335 = vld [vmem:[#allocation8 + $0x50] sm:$0xf]
    %v1336 = vld [vmem:[#allocation8 + $0x54] sm:$0xf]
    %v1337 = vld [vmem:[#allocation8 + $0x58] sm:$0xf]
    %v1338 = vld [vmem:[#allocation8 + $0x5c] sm:$0xf]
    %v1339 = vld [vmem:[#allocation8 + $0x60] sm:$0xf]
    %v1340 = vld [vmem:[#allocation8 + $0x64] sm:$0xf]
    %v1341 = vld [vmem:[#allocation8 + $0x68] sm:$0xf]
    %v1342 = vld [vmem:[#allocation8 + $0x6c] sm:$0xf]
    %v1343 = vld [vmem:[#allocation8 + $0x70] sm:$0xf]
    %v1344 = vld [vmem:[#allocation8 + $0x74] sm:$0xf]
    %v1345 = vld [vmem:[#allocation8 + $0x78] sm:$0xf]
    %v1346 = vld [vmem:[#allocation8 + $0x7c] sm:$0xf]
    %v1347 = vld [vmem:[%s12] sm:$0x1]
    %v1349 = vperm.slane %v1347, 0
    %v1383 = vunpack.c.l.b16 %v1315
    %v1384 = vunpack.c.l.b16 %v1316
    %v1385 = vunpack.c.l.b16 %v1317
    %v1386 = vunpack.c.l.b16 %v1318
    %v1387 = vunpack.c.l.b16 %v1319
    %v1388 = vunpack.c.l.b16 %v1320
    %v1389 = vunpack.c.l.b16 %v1321
    %v1390 = vunpack.c.l.b16 %v1322
    %v1391 = vunpack.c.l.b16 %v1323
    %v1392 = vunpack.c.l.b16 %v1324
    %v1393 = vunpack.c.l.b16 %v1325
    %v1394 = vunpack.c.l.b16 %v1326
    %v1395 = vunpack.c.l.b16 %v1327
    %v1396 = vunpack.c.l.b16 %v1328
    %v1397 = vunpack.c.l.b16 %v1329
    %v1398 = vunpack.c.l.b16 %v1330
    %v1399 = vunpack.c.l.b16 %v1331
    %v1400 = vunpack.c.l.b16 %v1332
    %v1401 = vunpack.c.l.b16 %v1333
    %v1402 = vunpack.c.l.b16 %v1334
    %v1403 = vunpack.c.l.b16 %v1335
    %v1404 = vunpack.c.l.b16 %v1336
    %v1405 = vunpack.c.l.b16 %v1337
    %v1406 = vunpack.c.l.b16 %v1338
    %v1407 = vunpack.c.l.b16 %v1339
    %v1408 = vunpack.c.l.b16 %v1340
    %v1409 = vunpack.c.l.b16 %v1341
    %v1410 = vunpack.c.l.b16 %v1342
    %v1411 = vunpack.c.l.b16 %v1343
    %v1412 = vunpack.c.l.b16 %v1344
    %v1413 = vunpack.c.l.b16 %v1345
    %v1414 = vunpack.c.l.b16 %v1346
    %v1415 = vpack.c.b16 %v1384, %v1383
    %v1416 = vpack.c.b16 %v1386, %v1385
    %v1417 = vpack.c.b16 %v1388, %v1387
    %v1418 = vpack.c.b16 %v1390, %v1389
    %v1419 = vpack.c.b16 %v1392, %v1391
    %v1420 = vpack.c.b16 %v1394, %v1393
    %v1421 = vpack.c.b16 %v1396, %v1395
    %v1422 = vpack.c.b16 %v1398, %v1397
    %v1423 = vpack.c.b16 %v1400, %v1399
    %v1424 = vpack.c.b16 %v1402, %v1401
    %v1425 = vpack.c.b16 %v1404, %v1403
    %v1426 = vpack.c.b16 %v1406, %v1405
    %v1427 = vpack.c.b16 %v1408, %v1407
    %v1428 = vpack.c.b16 %v1410, %v1409
    %v1429 = vpack.c.b16 %v1412, %v1411
    %v1430 = vpack.c.b16 %v1414, %v1413
    %1447 = vmatpush.bf16.msra.mxu0 %v1422
    %1448 = vmatpush.bf16.msra.mxu0 %v1421
    %1449 = vmatpush.bf16.msra.mxu0 %v1420
    %1450 = vmatpush.bf16.msra.mxu0 %v1419
    %1451 = vmatpush.bf16.msra.mxu0 %v1418
    %1452 = vmatpush.bf16.msra.mxu0 %v1417
    %1453 = vmatpush.bf16.msra.mxu0 %v1416
    %1454 = vmatpush.bf16.msra.mxu0 %v1415
    %1455 = vmatmul.bf16.gmra.mxu0 %v1313
    %v1456 = vpop.f32.mrf.mxu0
    %v1457 = vadd.f32 %v1349, %v1456
    %v1458 = vpop.f32.mrf.mxu0
    %1459 = vdwg.mxu0
    %1460 = vmatpush.bf16.msra.mxu0 %v1430
    %1461 = vmatpush.bf16.msra.mxu0 %v1429
    %1462 = vmatpush.bf16.msra.mxu0 %v1428
    %1463 = vmatpush.bf16.msra.mxu0 %v1427
    %1464 = vmatpush.bf16.msra.mxu0 %v1426
    %1465 = vmatpush.bf16.msra.mxu0 %v1425
    %1466 = vmatpush.bf16.msra.mxu0 %v1424
    %1467 = vmatpush.bf16.msra.mxu0 %v1423
    %1468 = vmatmul.bf16.gmra.mxu0 %v1314
    %v1469 = vpop.f32.mrf.mxu0
    %v1470 = vadd.f32 %v1457, %v1469
    %v1471 = vpop.f32.mrf.mxu0
    %1472 = vdwg.mxu0
    %v1473 = vmul.f32 %v1470, 0.1
    %v1474 = vmax.f32 %v1470, %v1473
    %v1475 = vpack.c.bf16 %v1474, %v1474
    %v1476 = vld [vmem:[%s13] sm:$0xf]
    %v1477 = vld [vmem:[%s13 + $0x4] sm:$0xf]
    %v1478 = vld [vmem:[%s13 + $0x8] sm:$0xf]
    %v1479 = vld [vmem:[%s13 + $0xc] sm:$0xf]
    %v1480 = vld [vmem:[%s13 + $0x10] sm:$0xf]
    %v1481 = vld [vmem:[%s13 + $0x14] sm:$0xf]
    %v1482 = vld [vmem:[%s13 + $0x18] sm:$0xf]
    %v1483 = vld [vmem:[%s13 + $0x1c] sm:$0xf]
    %v1484 = vld [vmem:[%s13 + $0x20] sm:$0xf]
    %v1485 = vld [vmem:[%s13 + $0x24] sm:$0xf]
    %v1486 = vld [vmem:[%s13 + $0x28] sm:$0xf]
    %v1487 = vld [vmem:[%s13 + $0x2c] sm:$0xf]
    %v1488 = vld [vmem:[%s13 + $0x30] sm:$0xf]
    %v1489 = vld [vmem:[%s13 + $0x34] sm:$0xf]
    %v1490 = vld [vmem:[%s13 + $0x38] sm:$0xf]
    %v1491 = vld [vmem:[%s13 + $0x3c] sm:$0xf]
    %v1492 = vld [vmem:[%s14] sm:$0x1]
    %v1494 = vperm.slane %v1492, 0
    %v1512 = vunpack.c.l.b16 %v1476
    %v1513 = vunpack.c.l.b16 %v1477
    %v1514 = vunpack.c.l.b16 %v1478
    %v1515 = vunpack.c.l.b16 %v1479
    %v1516 = vunpack.c.l.b16 %v1480
    %v1517 = vunpack.c.l.b16 %v1481
    %v1518 = vunpack.c.l.b16 %v1482
    %v1519 = vunpack.c.l.b16 %v1483
    %v1520 = vunpack.c.l.b16 %v1484
    %v1521 = vunpack.c.l.b16 %v1485
    %v1522 = vunpack.c.l.b16 %v1486
    %v1523 = vunpack.c.l.b16 %v1487
    %v1524 = vunpack.c.l.b16 %v1488
    %v1525 = vunpack.c.l.b16 %v1489
    %v1526 = vunpack.c.l.b16 %v1490
    %v1527 = vunpack.c.l.b16 %v1491
    %v1528 = vpack.c.b16 %v1513, %v1512
    %v1529 = vpack.c.b16 %v1515, %v1514
    %v1530 = vpack.c.b16 %v1517, %v1516
    %v1531 = vpack.c.b16 %v1519, %v1518
    %v1532 = vpack.c.b16 %v1521, %v1520
    %v1533 = vpack.c.b16 %v1523, %v1522
    %v1534 = vpack.c.b16 %v1525, %v1524
    %v1535 = vpack.c.b16 %v1527, %v1526
    %1544 = vmatpush.bf16.msra.mxu0 %v1535
    %1545 = vmatpush.bf16.msra.mxu0 %v1534
    %1546 = vmatpush.bf16.msra.mxu0 %v1533
    %1547 = vmatpush.bf16.msra.mxu0 %v1532
    %1548 = vmatpush.bf16.msra.mxu0 %v1531
    %1549 = vmatpush.bf16.msra.mxu0 %v1530
    %1550 = vmatpush.bf16.msra.mxu0 %v1529
    %1551 = vmatpush.bf16.msra.mxu0 %v1528
    %1552 = vmatmul.bf16.gmra.mxu0 %v1475
    %v1553 = vpop.f32.mrf.mxu0
    %v1554 = vadd.f32 %v1494, %v1553
    %v1555 = vpop.f32.mrf.mxu0
    %1556 = vdwg.mxu0
    %vm1557 = vcmask 25600
    %1558 = vst.msk [vmem:[#allocation10] sm:$0x3] %vm1557, %v1554
    // Predicated region
    $region78: #{critic_forward.1} parent=1 // pred_check
      _
    $region79: #{critic_forward.1} parent=1 // pred_check_branch
      %1560 = sbr.rel (0) target = $region81
    $region80: #{critic_forward.1} parent=1 // pred_region
      %1562 = vsyncadd [#allocation4], 0
      %s1564 = sshll.u32 [#allocation10], 4
      %s1565 = int_to_ptr.vmem [resolvable:$true] %s1564
      %s1566 = sshll.u32 %s15, 4
      %s1567 = int_to_ptr.hbm [resolvable:$true] %s1566
      %1569 = dma.vmem_to_hbm [thread:$0]  %s1565, 32, %s1567, [#allocation4]
    $region81: #{critic_forward.1} parent=1 // pred_fallthru
      _
    // Predicated region
    $region82: #{critic_forward.1} parent=1 // pred_check
      _
    $region83: #{critic_forward.1} parent=1 // pred_check_branch
      %1571 = sbr.rel (0) target = $region85
    $region84: #{critic_forward.1} parent=1 // pred_region
      %1573 = dma.done [#allocation4], 32
    $region85: #{critic_forward.1} parent=1 // pred_fallthru
      _
    %1574 = vsyncpa [#allocation3], 1
    %1575 = vsyncpa [#allocation6], 1
    %1576 = vsyncpa [#allocation9], 1
    %1577 = vsyncpa [#allocation4], 1

</llo_original>
